<compile_context>
chip_gen: v6e
topology: v6e:2x2x1
jax: 0.10.0
libtpu: 0.0.40
codegen_flags: <defaults>
</compile_context>

<pallas_src>
import functools

import jax
import jax.numpy as jnp
from jax.experimental import pallas as pl
from jax.experimental.pallas import tpu as pltpu


# ------------------------------ fused kernel --------------------------------
def error_vae_kernel(
    # ---- inputs (all resident in VMEM) ----
    x_ref,                                    # (T*Bp, D) time-major, batch-padded
    noise_ref,                                # (Bp, Z)
    wih_ref, bih_ref,                         # (D, 6H), (1, 6H)   [enc | dec]
    enc_whh_ref, enc_bhh_ref,                 # (H, 3H), (1, 3H)
    dec_whh_ref, dec_bhh_ref,                 # (H, 3H), (1, 3H)
    head_w_ref, head_b_ref,                   # (H, 2Z), (1, 2Z)   [mu | logsigma]
    z2h_w_ref, z2h_b_ref,                     # (Z, H),  (1, H)
    out_w_ref, out_b_ref,                     # (H, D),  (1, D)
    # ---- outputs ----
    recon_ref,                                # (T*Bp, D)
    mu_ref,                                   # (Bp, Z)
    ls_ref,                                   # (Bp, Z)
    # ---- VMEM scratch ----
    gi_enc_ref,                               # (T*Bp, 3H)
    gi_dec_ref,                               # (T*Bp, 3H)
    *, Bp, T, H, Z):
    f32 = jnp.float32
    H3 = 3 * H

    # -------- prologue: one fused input-side matmul for BOTH GRUs ----------
    gi_all = (jnp.dot(x_ref[...], wih_ref[...], preferred_element_type=f32)
              + bih_ref[...])                                   # (T*Bp, 6H)
    gi_enc_ref[...] = gi_all[:, :H3]
    gi_dec_ref[...] = gi_all[:, H3:]

    enc_whh = enc_whh_ref[...]
    dec_whh = dec_whh_ref[...]
    # Hoist bias broadcasts out of the time loops (JAX does not CSE them).
    enc_bhh = jnp.broadcast_to(enc_bhh_ref[...], (Bp, H3))
    dec_bhh = jnp.broadcast_to(dec_bhh_ref[...], (Bp, H3))

    def gru_step(h_prev, gi_t, whh, bhh):
        """One PyTorch-style GRU step; gi_t = x_t @ W_ih + b_ih precomputed."""
        gh = jnp.dot(h_prev, whh, preferred_element_type=f32) + bhh
        # single EUP push for the contiguous [r | z] lane range
        rz = jax.nn.sigmoid(gi_t[:, :2 * H] + gh[:, :2 * H])
        r = rz[:, :H]
        z = rz[:, H:]
        n = jnp.tanh(gi_t[:, 2 * H:] + r * gh[:, 2 * H:])       # PyTorch n-gate
        return (1.0 - z) * n + z * h_prev

    # -------- encoder GRU: only the final hidden state is needed -----------
    h = jnp.zeros((Bp, H), f32)
    for t in range(T):                                           # static unroll
        h = gru_step(h, gi_enc_ref[t * Bp:(t + 1) * Bp, :], enc_whh, enc_bhh)

    # -------- fused mu / logsigma head --------------------------------------
    head = (jnp.dot(h, head_w_ref[...], preferred_element_type=f32)
            + head_b_ref[...])                                   # (Bp, 2Z)
    mu = head[:, :Z]
    ls = head[:, Z:]
    mu_ref[...] = mu
    ls_ref[...] = ls

    # -------- reparameterisation (exactly as in the module) + z2h ----------
    # NOTE: intentionally mu + exp(logsigma)*0.5*noise, matching ErrorVAE.reparam
    z = mu + jnp.exp(ls) * 0.5 * noise_ref[...]
    hd = jnp.tanh(jnp.dot(z, z2h_w_ref[...], preferred_element_type=f32)
                  + z2h_b_ref[...])                              # (Bp, H)

    # -------- decoder GRU: hidden states stay in vregs ----------------------
    dec_hs = []
    for t in range(T):
        hd = gru_step(hd, gi_dec_ref[t * Bp:(t + 1) * Bp, :], dec_whh, dec_bhh)
        dec_hs.append(hd)
    dec_hs = jnp.concatenate(dec_hs, axis=0)                     # (T*Bp, H)

    # -------- output projection: one matmul over all timesteps -------------
    recon_ref[...] = (jnp.dot(dec_hs, out_w_ref[...], preferred_element_type=f32)
                      + out_b_ref[...])


# ------------------------------ wrapper --------------------------------------
def error_vae_forward(eps, params, noise):
    """eps: (B, T, D) float32, noise: (B, Z) float32.
    Returns (recon (B,T,D), mu (B,Z), logsigma (B,Z))."""
    B, T, D = eps.shape
    H = params["enc_whh"].shape[0]
    Z = params["mu_w"].shape[1]
    Bp = ((B + 7) // 8) * 8                     # pad batch to sublane width

    # Time-major flatten + batch padding: every per-timestep slice inside the
    # kernel becomes a full, 8-sublane-aligned tile.  Tiny; fuses into the jit.
    x_tm = jnp.transpose(eps, (1, 0, 2))                         # (T, B, D)
    x_tm = jnp.pad(x_tm, ((0, 0), (0, Bp - B), (0, 0)))
    x_tm = x_tm.reshape(T * Bp, D)
    noise_p = jnp.pad(noise, ((0, Bp - B), (0, 0)))

    # Fuse paired weight matrices (done once per call, outside the kernel).
    wih_cat = jnp.concatenate([params["enc_wih"], params["dec_wih"]], axis=1)
    bih_cat = jnp.concatenate([params["enc_bih"], params["dec_bih"]], axis=1)
    head_w = jnp.concatenate([params["mu_w"], params["ls_w"]], axis=1)
    head_b = jnp.concatenate([params["mu_b"], params["ls_b"]], axis=1)

    kernel = functools.partial(error_vae_kernel, Bp=Bp, T=T, H=H, Z=Z)

    recon2d, mu_p, ls_p = pl.pallas_call(
        kernel,
        out_shape=(
            jax.ShapeDtypeStruct((T * Bp, D), jnp.float32),
            jax.ShapeDtypeStruct((Bp, Z), jnp.float32),
            jax.ShapeDtypeStruct((Bp, Z), jnp.float32),
        ),
        scratch_shapes=[
            pltpu.VMEM((T * Bp, 3 * H), jnp.float32),   # gi_enc
            pltpu.VMEM((T * Bp, 3 * H), jnp.float32),   # gi_dec
        ],
        compiler_params=pltpu.CompilerParams(vmem_limit_bytes=8 * 1024 * 1024),
        cost_estimate=pl.CostEstimate(flops=1_000_000,
                                      transcendentals=14_000,
                                      bytes_accessed=64_000),
    )(x_tm, noise_p, wih_cat, bih_cat,
      params["enc_whh"], params["enc_bhh"],
      params["dec_whh"], params["dec_bhh"],
      head_w, head_b,
      params["z2h_w"], params["z2h_b"],
      params["out_w"], params["out_b"])

    recon = recon2d.reshape(T, Bp, D)[:, :B, :].transpose(1, 0, 2)
    return recon, mu_p[:B], ls_p[:B]


# --------------------------- pure-JAX reference ------------------------------
def _gru_ref(x_btd, h0, wih, whh, bih, bhh):
    H = h0.shape[-1]

    def step(h, x_t):
        gi = x_t @ wih + bih
        gh = h @ whh + bhh
        r = jax.nn.sigmoid(gi[:, :H] + gh[:, :H])
        z = jax.nn.sigmoid(gi[:, H:2 * H] + gh[:, H:2 * H])
        n = jnp.tanh(gi[:, 2 * H:] + r * gh[:, 2 * H:])
        h_new = (1.0 - z) * n + z * h
        return h_new, h_new

    h_last, hs = jax.lax.scan(step, h0, jnp.transpose(x_btd, (1, 0, 2)))
    return jnp.transpose(hs, (1, 0, 2)), h_last


def error_vae_reference(eps, params, noise):
    B, _, _ = eps.shape
    H = params["enc_whh"].shape[0]
    h0 = jnp.zeros((B, H), jnp.float32)
    _, h = _gru_ref(eps, h0, params["enc_wih"], params["enc_whh"],
                    params["enc_bih"], params["enc_bhh"])
    mu = h @ params["mu_w"] + params["mu_b"]
    ls = h @ params["ls_w"] + params["ls_b"]
    z = mu + jnp.exp(ls) * 0.5 * noise
    hd0 = jnp.tanh(z @ params["z2h_w"] + params["z2h_b"])
    dec_hs, _ = _gru_ref(eps, hd0, params["dec_wih"], params["dec_whh"],
                         params["dec_bih"], params["dec_bhh"])
    recon = dec_hs @ params["out_w"] + params["out_b"]
    return recon, mu, ls


# ------------------------- parameter construction ----------------------------
def init_params(key, d, h, z):
    """Deterministic init (uniform, PyTorch-like scale).  GRU weights stored
    pre-transposed as (in, 3h) with gate order [r, z, n] along the column."""
    ks = jax.random.split(key, 16)
    s_gru = 1.0 / jnp.sqrt(h)

    def u(k, shape, scale):
        return jax.random.uniform(k, shape, jnp.float32, -scale, scale)

    return {
        "enc_wih": u(ks[0], (d, 3 * h), s_gru),
        "enc_whh": u(ks[1], (h, 3 * h), s_gru),
        "enc_bih": u(ks[2], (1, 3 * h), s_gru),
        "enc_bhh": u(ks[3], (1, 3 * h), s_gru),
        "dec_wih": u(ks[4], (d, 3 * h), s_gru),
        "dec_whh": u(ks[5], (h, 3 * h), s_gru),
        "dec_bih": u(ks[6], (1, 3 * h), s_gru),
        "dec_bhh": u(ks[7], (1, 3 * h), s_gru),
        "mu_w": u(ks[8], (h, z), 1.0 / jnp.sqrt(h)),
        "mu_b": u(ks[9], (1, z), 1.0 / jnp.sqrt(h)),
        "ls_w": u(ks[10], (h, z), 1.0 / jnp.sqrt(h)),
        "ls_b": u(ks[11], (1, z), 1.0 / jnp.sqrt(h)),
        "z2h_w": u(ks[12], (z, h), 1.0 / jnp.sqrt(z)),
        "z2h_b": u(ks[13], (1, h), 1.0 / jnp.sqrt(z)),
        "out_w": u(ks[14], (h, d), 1.0 / jnp.sqrt(h)),
        "out_b": u(ks[15], (1, d), 1.0 / jnp.sqrt(h)),
    }


if __name__ == "__main__":
    B, T, D, H, Z = 2, 8, 4, 32, 8   # ErrorVAE(d=4, h=32, z=8), batch=2, seq=8

    key = jax.random.PRNGKey(0)
    k_data, k_params, k_noise = jax.random.split(key, 3)

    eps = jax.random.normal(k_data, (B, T, D), jnp.float32)
    params = init_params(k_params, D, H, Z)
    noise = jax.random.normal(k_noise, (B, Z), jnp.float32)

    fwd = jax.jit(error_vae_forward)
    recon, mu, logsig = fwd(eps, params, noise)
    jax.block_until_ready((recon, mu, logsig))

    assert recon.shape == (B, T, D)
    assert mu.shape == (B, Z) and logsig.shape == (B, Z)

    # Correctness vs pure-JAX reference (same noise, same params).
    r_ref, m_ref, l_ref = error_vae_reference(eps, params, noise)
    assert jnp.allclose(recon, r_ref, atol=2e-3, rtol=2e-3)
    assert jnp.allclose(mu, m_ref, atol=2e-3, rtol=2e-3)
    assert jnp.allclose(logsig, l_ref, atol=2e-3, rtol=2e-3)

    print("KERNEL_OK")
</pallas_src>

<mosaic_0001>
module attributes {stable_mosaic.version = 11 : i64} {
  func.func @error_vae_kernel(%arg0: memref<64x4xf32, #tpu.memory_space<vmem>>, %arg1: memref<8x8xf32, #tpu.memory_space<vmem>>, %arg2: memref<4x192xf32, #tpu.memory_space<vmem>>, %arg3: memref<1x192xf32, #tpu.memory_space<vmem>>, %arg4: memref<32x96xf32, #tpu.memory_space<vmem>>, %arg5: memref<1x96xf32, #tpu.memory_space<vmem>>, %arg6: memref<32x96xf32, #tpu.memory_space<vmem>>, %arg7: memref<1x96xf32, #tpu.memory_space<vmem>>, %arg8: memref<32x16xf32, #tpu.memory_space<vmem>>, %arg9: memref<1x16xf32, #tpu.memory_space<vmem>>, %arg10: memref<8x32xf32, #tpu.memory_space<vmem>>, %arg11: memref<1x32xf32, #tpu.memory_space<vmem>>, %arg12: memref<32x4xf32, #tpu.memory_space<vmem>>, %arg13: memref<1x4xf32, #tpu.memory_space<vmem>>, %arg14: memref<64x4xf32, #tpu.memory_space<vmem>>, %arg15: memref<8x8xf32, #tpu.memory_space<vmem>>, %arg16: memref<8x8xf32, #tpu.memory_space<vmem>>, %arg17: memref<64x96xf32, #tpu.memory_space<vmem>>, %arg18: memref<64x96xf32, #tpu.memory_space<vmem>>) attributes {dimension_semantics = [], scalar_prefetch = 0 : i64, scratch_operands = 2 : i64, tpu.core_type = #tpu.core_type<tc>} {
    %c0 = arith.constant 0 : index
    %c0_0 = arith.constant 0 : index
    %0 = vector.load %arg0[%c0, %c0_0] : memref<64x4xf32, #tpu.memory_space<vmem>>, vector<64x4xf32>
    %c0_1 = arith.constant 0 : index
    %c0_2 = arith.constant 0 : index
    %1 = vector.load %arg2[%c0_1, %c0_2] : memref<4x192xf32, #tpu.memory_space<vmem>>, vector<4x192xf32>
    %cst = arith.constant dense<0.000000e+00> : vector<64x192xf32>
    %2 = tpu.matmul %0, %1, %cst {dimension_numbers = #tpu.dot_dimension_numbers<[1], [0], [0], [1], [0, 0, 1, 1], [], []>} : vector<64x4xf32>, vector<4x192xf32>, vector<64x192xf32> -> vector<64x192xf32>
    %c0_3 = arith.constant 0 : index
    %c0_4 = arith.constant 0 : index
    %3 = vector.load %arg3[%c0_3, %c0_4] : memref<1x192xf32, #tpu.memory_space<vmem>>, vector<1x192xf32>
    %4 = vector.broadcast %3 : vector<1x192xf32> to vector<64x192xf32>
    %5 = arith.addf %2, %4 : vector<64x192xf32>
    %6 = vector.extract_strided_slice %5 {offsets = [0, 0], sizes = [64, 96], strides = [1, 1]} : vector<64x192xf32> to vector<64x96xf32>
    %c0_5 = arith.constant 0 : index
    %c0_6 = arith.constant 0 : index
    %7 = vector.load %arg17[%c0_5, %c0_6] : memref<64x96xf32, #tpu.memory_space<vmem>>, vector<64x96xf32>
    tpu.vector_store %arg17[%c0_5, %c0_6], %6 {strides = array<i32>} : memref<64x96xf32, #tpu.memory_space<vmem>>, vector<64x96xf32>,
    %8 = vector.extract_strided_slice %5 {offsets = [0, 96], sizes = [64, 96], strides = [1, 1]} : vector<64x192xf32> to vector<64x96xf32>
    %c0_7 = arith.constant 0 : index
    %c0_8 = arith.constant 0 : index
    %9 = vector.load %arg18[%c0_7, %c0_8] : memref<64x96xf32, #tpu.memory_space<vmem>>, vector<64x96xf32>
    tpu.vector_store %arg18[%c0_7, %c0_8], %8 {strides = array<i32>} : memref<64x96xf32, #tpu.memory_space<vmem>>, vector<64x96xf32>,
    %c0_9 = arith.constant 0 : index
    %c0_10 = arith.constant 0 : index
    %10 = vector.load %arg4[%c0_9, %c0_10] : memref<32x96xf32, #tpu.memory_space<vmem>>, vector<32x96xf32>
    %c0_11 = arith.constant 0 : index
    %c0_12 = arith.constant 0 : index
    %11 = vector.load %arg6[%c0_11, %c0_12] : memref<32x96xf32, #tpu.memory_space<vmem>>, vector<32x96xf32>
    %c0_13 = arith.constant 0 : index
    %c0_14 = arith.constant 0 : index
    %12 = vector.load %arg5[%c0_13, %c0_14] : memref<1x96xf32, #tpu.memory_space<vmem>>, vector<1x96xf32>
    %13 = vector.shape_cast %12 : vector<1x96xf32> to vector<1x96xf32>
    %14 = vector.broadcast %13 : vector<1x96xf32> to vector<8x96xf32>
    %c0_15 = arith.constant 0 : index
    %c0_16 = arith.constant 0 : index
    %15 = vector.load %arg7[%c0_15, %c0_16] : memref<1x96xf32, #tpu.memory_space<vmem>>, vector<1x96xf32>
    %16 = vector.shape_cast %15 : vector<1x96xf32> to vector<1x96xf32>
    %17 = vector.broadcast %16 : vector<1x96xf32> to vector<8x96xf32>
    %cst_17 = arith.constant 0.000000e+00 : f32
    %18 = vector.broadcast %cst_17 : f32 to vector<8x32xf32>
    %c0_18 = arith.constant 0 : index
    %c0_19 = arith.constant 0 : index
    %19 = vector.load %arg17[%c0_18, %c0_19] : memref<64x96xf32, #tpu.memory_space<vmem>>, vector<8x96xf32>
    %cst_20 = arith.constant dense<0.000000e+00> : vector<8x96xf32>
    %20 = tpu.matmul %18, %10, %cst_20 {dimension_numbers = #tpu.dot_dimension_numbers<[1], [0], [0], [1], [0, 0, 1, 1], [], []>} : vector<8x32xf32>, vector<32x96xf32>, vector<8x96xf32> -> vector<8x96xf32>
    %21 = arith.addf %20, %14 : vector<8x96xf32>
    %22 = vector.extract_strided_slice %19 {offsets = [0, 0], sizes = [8, 64], strides = [1, 1]} : vector<8x96xf32> to vector<8x64xf32>
    %23 = vector.extract_strided_slice %21 {offsets = [0, 0], sizes = [8, 64], strides = [1, 1]} : vector<8x96xf32> to vector<8x64xf32>
    %24 = arith.addf %22, %23 : vector<8x64xf32>
    %25 = arith.negf %24 : vector<8x64xf32>
    %26 = math.exp %25 : vector<8x64xf32>
    %cst_21 = arith.constant 1.000000e+00 : f32
    %27 = vector.broadcast %cst_21 : f32 to vector<8x64xf32>
    %28 = arith.addf %27, %26 : vector<8x64xf32>
    %29 = arith.divf %27, %28 : vector<8x64xf32>
    %30 = vector.extract_strided_slice %29 {offsets = [0, 0], sizes = [8, 32], strides = [1, 1]} : vector<8x64xf32> to vector<8x32xf32>
    %31 = vector.extract_strided_slice %29 {offsets = [0, 32], sizes = [8, 32], strides = [1, 1]} : vector<8x64xf32> to vector<8x32xf32>
    %32 = vector.extract_strided_slice %19 {offsets = [0, 64], sizes = [8, 32], strides = [1, 1]} : vector<8x96xf32> to vector<8x32xf32>
    %33 = vector.extract_strided_slice %21 {offsets = [0, 64], sizes = [8, 32], strides = [1, 1]} : vector<8x96xf32> to vector<8x32xf32>
    %34 = arith.mulf %30, %33 : vector<8x32xf32>
    %35 = arith.addf %32, %34 : vector<8x32xf32>
    %36 = math.tanh %35 : vector<8x32xf32>
    %cst_22 = arith.constant 1.000000e+00 : f32
    %37 = vector.broadcast %cst_22 : f32 to vector<8x32xf32>
    %38 = arith.subf %37, %31 : vector<8x32xf32>
    %39 = arith.mulf %38, %36 : vector<8x32xf32>
    %40 = arith.mulf %31, %18 : vector<8x32xf32>
    %41 = arith.addf %39, %40 : vector<8x32xf32>
    %c8 = arith.constant 8 : index
    %c0_23 = arith.constant 0 : index
    %42 = vector.load %arg17[%c8, %c0_23] : memref<64x96xf32, #tpu.memory_space<vmem>>, vector<8x96xf32>
    %cst_24 = arith.constant dense<0.000000e+00> : vector<8x96xf32>
    %43 = tpu.matmul %41, %10, %cst_24 {dimension_numbers = #tpu.dot_dimension_numbers<[1], [0], [0], [1], [0, 0, 1, 1], [], []>} : vector<8x32xf32>, vector<32x96xf32>, vector<8x96xf32> -> vector<8x96xf32>
    %44 = arith.addf %43, %14 : vector<8x96xf32>
    %45 = vector.extract_strided_slice %42 {offsets = [0, 0], sizes = [8, 64], strides = [1, 1]} : vector<8x96xf32> to vector<8x64xf32>
    %46 = vector.extract_strided_slice %44 {offsets = [0, 0], sizes = [8, 64], strides = [1, 1]} : vector<8x96xf32> to vector<8x64xf32>
    %47 = arith.addf %45, %46 : vector<8x64xf32>
    %48 = arith.negf %47 : vector<8x64xf32>
    %49 = math.exp %48 : vector<8x64xf32>
    %cst_25 = arith.constant 1.000000e+00 : f32
    %50 = vector.broadcast %cst_25 : f32 to vector<8x64xf32>
    %51 = arith.addf %50, %49 : vector<8x64xf32>
    %52 = arith.divf %50, %51 : vector<8x64xf32>
    %53 = vector.extract_strided_slice %52 {offsets = [0, 0], sizes = [8, 32], strides = [1, 1]} : vector<8x64xf32> to vector<8x32xf32>
    %54 = vector.extract_strided_slice %52 {offsets = [0, 32], sizes = [8, 32], strides = [1, 1]} : vector<8x64xf32> to vector<8x32xf32>
    %55 = vector.extract_strided_slice %42 {offsets = [0, 64], sizes = [8, 32], strides = [1, 1]} : vector<8x96xf32> to vector<8x32xf32>
    %56 = vector.extract_strided_slice %44 {offsets = [0, 64], sizes = [8, 32], strides = [1, 1]} : vector<8x96xf32> to vector<8x32xf32>
    %57 = arith.mulf %53, %56 : vector<8x32xf32>
    %58 = arith.addf %55, %57 : vector<8x32xf32>
    %59 = math.tanh %58 : vector<8x32xf32>
    %cst_26 = arith.constant 1.000000e+00 : f32
    %60 = vector.broadcast %cst_26 : f32 to vector<8x32xf32>
    %61 = arith.subf %60, %54 : vector<8x32xf32>
    %62 = arith.mulf %61, %59 : vector<8x32xf32>
    %63 = arith.mulf %54, %41 : vector<8x32xf32>
    %64 = arith.addf %62, %63 : vector<8x32xf32>
    %c16 = arith.constant 16 : index
    %c0_27 = arith.constant 0 : index
    %65 = vector.load %arg17[%c16, %c0_27] : memref<64x96xf32, #tpu.memory_space<vmem>>, vector<8x96xf32>
    %cst_28 = arith.constant dense<0.000000e+00> : vector<8x96xf32>
    %66 = tpu.matmul %64, %10, %cst_28 {dimension_numbers = #tpu.dot_dimension_numbers<[1], [0], [0], [1], [0, 0, 1, 1], [], []>} : vector<8x32xf32>, vector<32x96xf32>, vector<8x96xf32> -> vector<8x96xf32>
    %67 = arith.addf %66, %14 : vector<8x96xf32>
    %68 = vector.extract_strided_slice %65 {offsets = [0, 0], sizes = [8, 64], strides = [1, 1]} : vector<8x96xf32> to vector<8x64xf32>
    %69 = vector.extract_strided_slice %67 {offsets = [0, 0], sizes = [8, 64], strides = [1, 1]} : vector<8x96xf32> to vector<8x64xf32>
    %70 = arith.addf %68, %69 : vector<8x64xf32>
    %71 = arith.negf %70 : vector<8x64xf32>
    %72 = math.exp %71 : vector<8x64xf32>
    %cst_29 = arith.constant 1.000000e+00 : f32
    %73 = vector.broadcast %cst_29 : f32 to vector<8x64xf32>
    %74 = arith.addf %73, %72 : vector<8x64xf32>
    %75 = arith.divf %73, %74 : vector<8x64xf32>
    %76 = vector.extract_strided_slice %75 {offsets = [0, 0], sizes = [8, 32], strides = [1, 1]} : vector<8x64xf32> to vector<8x32xf32>
    %77 = vector.extract_strided_slice %75 {offsets = [0, 32], sizes = [8, 32], strides = [1, 1]} : vector<8x64xf32> to vector<8x32xf32>
    %78 = vector.extract_strided_slice %65 {offsets = [0, 64], sizes = [8, 32], strides = [1, 1]} : vector<8x96xf32> to vector<8x32xf32>
    %79 = vector.extract_strided_slice %67 {offsets = [0, 64], sizes = [8, 32], strides = [1, 1]} : vector<8x96xf32> to vector<8x32xf32>
    %80 = arith.mulf %76, %79 : vector<8x32xf32>
    %81 = arith.addf %78, %80 : vector<8x32xf32>
    %82 = math.tanh %81 : vector<8x32xf32>
    %cst_30 = arith.constant 1.000000e+00 : f32
    %83 = vector.broadcast %cst_30 : f32 to vector<8x32xf32>
    %84 = arith.subf %83, %77 : vector<8x32xf32>
    %85 = arith.mulf %84, %82 : vector<8x32xf32>
    %86 = arith.mulf %77, %64 : vector<8x32xf32>
    %87 = arith.addf %85, %86 : vector<8x32xf32>
    %c24 = arith.constant 24 : index
    %c0_31 = arith.constant 0 : index
    %88 = vector.load %arg17[%c24, %c0_31] : memref<64x96xf32, #tpu.memory_space<vmem>>, vector<8x96xf32>
    %cst_32 = arith.constant dense<0.000000e+00> : vector<8x96xf32>
    %89 = tpu.matmul %87, %10, %cst_32 {dimension_numbers = #tpu.dot_dimension_numbers<[1], [0], [0], [1], [0, 0, 1, 1], [], []>} : vector<8x32xf32>, vector<32x96xf32>, vector<8x96xf32> -> vector<8x96xf32>
    %90 = arith.addf %89, %14 : vector<8x96xf32>
    %91 = vector.extract_strided_slice %88 {offsets = [0, 0], sizes = [8, 64], strides = [1, 1]} : vector<8x96xf32> to vector<8x64xf32>
    %92 = vector.extract_strided_slice %90 {offsets = [0, 0], sizes = [8, 64], strides = [1, 1]} : vector<8x96xf32> to vector<8x64xf32>
    %93 = arith.addf %91, %92 : vector<8x64xf32>
    %94 = arith.negf %93 : vector<8x64xf32>
    %95 = math.exp %94 : vector<8x64xf32>
    %cst_33 = arith.constant 1.000000e+00 : f32
    %96 = vector.broadcast %cst_33 : f32 to vector<8x64xf32>
    %97 = arith.addf %96, %95 : vector<8x64xf32>
    %98 = arith.divf %96, %97 : vector<8x64xf32>
    %99 = vector.extract_strided_slice %98 {offsets = [0, 0], sizes = [8, 32], strides = [1, 1]} : vector<8x64xf32> to vector<8x32xf32>
    %100 = vector.extract_strided_slice %98 {offsets = [0, 32], sizes = [8, 32], strides = [1, 1]} : vector<8x64xf32> to vector<8x32xf32>
    %101 = vector.extract_strided_slice %88 {offsets = [0, 64], sizes = [8, 32], strides = [1, 1]} : vector<8x96xf32> to vector<8x32xf32>
    %102 = vector.extract_strided_slice %90 {offsets = [0, 64], sizes = [8, 32], strides = [1, 1]} : vector<8x96xf32> to vector<8x32xf32>
    %103 = arith.mulf %99, %102 : vector<8x32xf32>
    %104 = arith.addf %101, %103 : vector<8x32xf32>
    %105 = math.tanh %104 : vector<8x32xf32>
    %cst_34 = arith.constant 1.000000e+00 : f32
    %106 = vector.broadcast %cst_34 : f32 to vector<8x32xf32>
    %107 = arith.subf %106, %100 : vector<8x32xf32>
    %108 = arith.mulf %107, %105 : vector<8x32xf32>
    %109 = arith.mulf %100, %87 : vector<8x32xf32>
    %110 = arith.addf %108, %109 : vector<8x32xf32>
    %c32 = arith.constant 32 : index
    %c0_35 = arith.constant 0 : index
    %111 = vector.load %arg17[%c32, %c0_35] : memref<64x96xf32, #tpu.memory_space<vmem>>, vector<8x96xf32>
    %cst_36 = arith.constant dense<0.000000e+00> : vector<8x96xf32>
    %112 = tpu.matmul %110, %10, %cst_36 {dimension_numbers = #tpu.dot_dimension_numbers<[1], [0], [0], [1], [0, 0, 1, 1], [], []>} : vector<8x32xf32>, vector<32x96xf32>, vector<8x96xf32> -> vector<8x96xf32>
    %113 = arith.addf %112, %14 : vector<8x96xf32>
    %114 = vector.extract_strided_slice %111 {offsets = [0, 0], sizes = [8, 64], strides = [1, 1]} : vector<8x96xf32> to vector<8x64xf32>
    %115 = vector.extract_strided_slice %113 {offsets = [0, 0], sizes = [8, 64], strides = [1, 1]} : vector<8x96xf32> to vector<8x64xf32>
    %116 = arith.addf %114, %115 : vector<8x64xf32>
    %117 = arith.negf %116 : vector<8x64xf32>
    %118 = math.exp %117 : vector<8x64xf32>
    %cst_37 = arith.constant 1.000000e+00 : f32
    %119 = vector.broadcast %cst_37 : f32 to vector<8x64xf32>
    %120 = arith.addf %119, %118 : vector<8x64xf32>
    %121 = arith.divf %119, %120 : vector<8x64xf32>
    %122 = vector.extract_strided_slice %121 {offsets = [0, 0], sizes = [8, 32], strides = [1, 1]} : vector<8x64xf32> to vector<8x32xf32>
    %123 = vector.extract_strided_slice %121 {offsets = [0, 32], sizes = [8, 32], strides = [1, 1]} : vector<8x64xf32> to vector<8x32xf32>
    %124 = vector.extract_strided_slice %111 {offsets = [0, 64], sizes = [8, 32], strides = [1, 1]} : vector<8x96xf32> to vector<8x32xf32>
    %125 = vector.extract_strided_slice %113 {offsets = [0, 64], sizes = [8, 32], strides = [1, 1]} : vector<8x96xf32> to vector<8x32xf32>
    %126 = arith.mulf %122, %125 : vector<8x32xf32>
    %127 = arith.addf %124, %126 : vector<8x32xf32>
    %128 = math.tanh %127 : vector<8x32xf32>
    %cst_38 = arith.constant 1.000000e+00 : f32
    %129 = vector.broadcast %cst_38 : f32 to vector<8x32xf32>
    %130 = arith.subf %129, %123 : vector<8x32xf32>
    %131 = arith.mulf %130, %128 : vector<8x32xf32>
    %132 = arith.mulf %123, %110 : vector<8x32xf32>
    %133 = arith.addf %131, %132 : vector<8x32xf32>
    %c40 = arith.constant 40 : index
    %c0_39 = arith.constant 0 : index
    %134 = vector.load %arg17[%c40, %c0_39] : memref<64x96xf32, #tpu.memory_space<vmem>>, vector<8x96xf32>
    %cst_40 = arith.constant dense<0.000000e+00> : vector<8x96xf32>
    %135 = tpu.matmul %133, %10, %cst_40 {dimension_numbers = #tpu.dot_dimension_numbers<[1], [0], [0], [1], [0, 0, 1, 1], [], []>} : vector<8x32xf32>, vector<32x96xf32>, vector<8x96xf32> -> vector<8x96xf32>
    %136 = arith.addf %135, %14 : vector<8x96xf32>
    %137 = vector.extract_strided_slice %134 {offsets = [0, 0], sizes = [8, 64], strides = [1, 1]} : vector<8x96xf32> to vector<8x64xf32>
    %138 = vector.extract_strided_slice %136 {offsets = [0, 0], sizes = [8, 64], strides = [1, 1]} : vector<8x96xf32> to vector<8x64xf32>
    %139 = arith.addf %137, %138 : vector<8x64xf32>
    %140 = arith.negf %139 : vector<8x64xf32>
    %141 = math.exp %140 : vector<8x64xf32>
    %cst_41 = arith.constant 1.000000e+00 : f32
    %142 = vector.broadcast %cst_41 : f32 to vector<8x64xf32>
    %143 = arith.addf %142, %141 : vector<8x64xf32>
    %144 = arith.divf %142, %143 : vector<8x64xf32>
    %145 = vector.extract_strided_slice %144 {offsets = [0, 0], sizes = [8, 32], strides = [1, 1]} : vector<8x64xf32> to vector<8x32xf32>
    %146 = vector.extract_strided_slice %144 {offsets = [0, 32], sizes = [8, 32], strides = [1, 1]} : vector<8x64xf32> to vector<8x32xf32>
    %147 = vector.extract_strided_slice %134 {offsets = [0, 64], sizes = [8, 32], strides = [1, 1]} : vector<8x96xf32> to vector<8x32xf32>
    %148 = vector.extract_strided_slice %136 {offsets = [0, 64], sizes = [8, 32], strides = [1, 1]} : vector<8x96xf32> to vector<8x32xf32>
    %149 = arith.mulf %145, %148 : vector<8x32xf32>
    %150 = arith.addf %147, %149 : vector<8x32xf32>
    %151 = math.tanh %150 : vector<8x32xf32>
    %cst_42 = arith.constant 1.000000e+00 : f32
    %152 = vector.broadcast %cst_42 : f32 to vector<8x32xf32>
    %153 = arith.subf %152, %146 : vector<8x32xf32>
    %154 = arith.mulf %153, %151 : vector<8x32xf32>
    %155 = arith.mulf %146, %133 : vector<8x32xf32>
    %156 = arith.addf %154, %155 : vector<8x32xf32>
    %c48 = arith.constant 48 : index
    %c0_43 = arith.constant 0 : index
    %157 = vector.load %arg17[%c48, %c0_43] : memref<64x96xf32, #tpu.memory_space<vmem>>, vector<8x96xf32>
    %cst_44 = arith.constant dense<0.000000e+00> : vector<8x96xf32>
    %158 = tpu.matmul %156, %10, %cst_44 {dimension_numbers = #tpu.dot_dimension_numbers<[1], [0], [0], [1], [0, 0, 1, 1], [], []>} : vector<8x32xf32>, vector<32x96xf32>, vector<8x96xf32> -> vector<8x96xf32>
    %159 = arith.addf %158, %14 : vector<8x96xf32>
    %160 = vector.extract_strided_slice %157 {offsets = [0, 0], sizes = [8, 64], strides = [1, 1]} : vector<8x96xf32> to vector<8x64xf32>
    %161 = vector.extract_strided_slice %159 {offsets = [0, 0], sizes = [8, 64], strides = [1, 1]} : vector<8x96xf32> to vector<8x64xf32>
    %162 = arith.addf %160, %161 : vector<8x64xf32>
    %163 = arith.negf %162 : vector<8x64xf32>
    %164 = math.exp %163 : vector<8x64xf32>
    %cst_45 = arith.constant 1.000000e+00 : f32
    %165 = vector.broadcast %cst_45 : f32 to vector<8x64xf32>
    %166 = arith.addf %165, %164 : vector<8x64xf32>
    %167 = arith.divf %165, %166 : vector<8x64xf32>
    %168 = vector.extract_strided_slice %167 {offsets = [0, 0], sizes = [8, 32], strides = [1, 1]} : vector<8x64xf32> to vector<8x32xf32>
    %169 = vector.extract_strided_slice %167 {offsets = [0, 32], sizes = [8, 32], strides = [1, 1]} : vector<8x64xf32> to vector<8x32xf32>
    %170 = vector.extract_strided_slice %157 {offsets = [0, 64], sizes = [8, 32], strides = [1, 1]} : vector<8x96xf32> to vector<8x32xf32>
    %171 = vector.extract_strided_slice %159 {offsets = [0, 64], sizes = [8, 32], strides = [1, 1]} : vector<8x96xf32> to vector<8x32xf32>
    %172 = arith.mulf %168, %171 : vector<8x32xf32>
    %173 = arith.addf %170, %172 : vector<8x32xf32>
    %174 = math.tanh %173 : vector<8x32xf32>
    %cst_46 = arith.constant 1.000000e+00 : f32
    %175 = vector.broadcast %cst_46 : f32 to vector<8x32xf32>
    %176 = arith.subf %175, %169 : vector<8x32xf32>
    %177 = arith.mulf %176, %174 : vector<8x32xf32>
    %178 = arith.mulf %169, %156 : vector<8x32xf32>
    %179 = arith.addf %177, %178 : vector<8x32xf32>
    %c56 = arith.constant 56 : index
    %c0_47 = arith.constant 0 : index
    %180 = vector.load %arg17[%c56, %c0_47] : memref<64x96xf32, #tpu.memory_space<vmem>>, vector<8x96xf32>
    %cst_48 = arith.constant dense<0.000000e+00> : vector<8x96xf32>
    %181 = tpu.matmul %179, %10, %cst_48 {dimension_numbers = #tpu.dot_dimension_numbers<[1], [0], [0], [1], [0, 0, 1, 1], [], []>} : vector<8x32xf32>, vector<32x96xf32>, vector<8x96xf32> -> vector<8x96xf32>
    %182 = arith.addf %181, %14 : vector<8x96xf32>
    %183 = vector.extract_strided_slice %180 {offsets = [0, 0], sizes = [8, 64], strides = [1, 1]} : vector<8x96xf32> to vector<8x64xf32>
    %184 = vector.extract_strided_slice %182 {offsets = [0, 0], sizes = [8, 64], strides = [1, 1]} : vector<8x96xf32> to vector<8x64xf32>
    %185 = arith.addf %183, %184 : vector<8x64xf32>
    %186 = arith.negf %185 : vector<8x64xf32>
    %187 = math.exp %186 : vector<8x64xf32>
    %cst_49 = arith.constant 1.000000e+00 : f32
    %188 = vector.broadcast %cst_49 : f32 to vector<8x64xf32>
    %189 = arith.addf %188, %187 : vector<8x64xf32>
    %190 = arith.divf %188, %189 : vector<8x64xf32>
    %191 = vector.extract_strided_slice %190 {offsets = [0, 0], sizes = [8, 32], strides = [1, 1]} : vector<8x64xf32> to vector<8x32xf32>
    %192 = vector.extract_strided_slice %190 {offsets = [0, 32], sizes = [8, 32], strides = [1, 1]} : vector<8x64xf32> to vector<8x32xf32>
    %193 = vector.extract_strided_slice %180 {offsets = [0, 64], sizes = [8, 32], strides = [1, 1]} : vector<8x96xf32> to vector<8x32xf32>
    %194 = vector.extract_strided_slice %182 {offsets = [0, 64], sizes = [8, 32], strides = [1, 1]} : vector<8x96xf32> to vector<8x32xf32>
    %195 = arith.mulf %191, %194 : vector<8x32xf32>
    %196 = arith.addf %193, %195 : vector<8x32xf32>
    %197 = math.tanh %196 : vector<8x32xf32>
    %cst_50 = arith.constant 1.000000e+00 : f32
    %198 = vector.broadcast %cst_50 : f32 to vector<8x32xf32>
    %199 = arith.subf %198, %192 : vector<8x32xf32>
    %200 = arith.mulf %199, %197 : vector<8x32xf32>
    %201 = arith.mulf %192, %179 : vector<8x32xf32>
    %202 = arith.addf %200, %201 : vector<8x32xf32>
    %c0_51 = arith.constant 0 : index
    %c0_52 = arith.constant 0 : index
    %203 = vector.load %arg8[%c0_51, %c0_52] : memref<32x16xf32, #tpu.memory_space<vmem>>, vector<32x16xf32>
    %cst_53 = arith.constant dense<0.000000e+00> : vector<8x16xf32>
    %204 = tpu.matmul %202, %203, %cst_53 {dimension_numbers = #tpu.dot_dimension_numbers<[1], [0], [0], [1], [0, 0, 1, 1], [], []>} : vector<8x32xf32>, vector<32x16xf32>, vector<8x16xf32> -> vector<8x16xf32>
    %c0_54 = arith.constant 0 : index
    %c0_55 = arith.constant 0 : index
    %205 = vector.load %arg9[%c0_54, %c0_55] : memref<1x16xf32, #tpu.memory_space<vmem>>, vector<1x16xf32>
    %206 = vector.broadcast %205 : vector<1x16xf32> to vector<8x16xf32>
    %207 = arith.addf %204, %206 : vector<8x16xf32>
    %208 = vector.extract_strided_slice %207 {offsets = [0, 0], sizes = [8, 8], strides = [1, 1]} : vector<8x16xf32> to vector<8x8xf32>
    %209 = vector.extract_strided_slice %207 {offsets = [0, 8], sizes = [8, 8], strides = [1, 1]} : vector<8x16xf32> to vector<8x8xf32>
    %c0_56 = arith.constant 0 : index
    %c0_57 = arith.constant 0 : index
    %210 = vector.load %arg15[%c0_56, %c0_57] : memref<8x8xf32, #tpu.memory_space<vmem>>, vector<8x8xf32>
    tpu.vector_store %arg15[%c0_56, %c0_57], %208 {strides = array<i32>} : memref<8x8xf32, #tpu.memory_space<vmem>>, vector<8x8xf32>,
    %c0_58 = arith.constant 0 : index
    %c0_59 = arith.constant 0 : index
    %211 = vector.load %arg16[%c0_58, %c0_59] : memref<8x8xf32, #tpu.memory_space<vmem>>, vector<8x8xf32>
    tpu.vector_store %arg16[%c0_58, %c0_59], %209 {strides = array<i32>} : memref<8x8xf32, #tpu.memory_space<vmem>>, vector<8x8xf32>,
    %212 = math.exp %209 : vector<8x8xf32>
    %cst_60 = arith.constant 5.000000e-01 : f32
    %213 = vector.broadcast %cst_60 : f32 to vector<8x8xf32>
    %214 = arith.mulf %212, %213 : vector<8x8xf32>
    %c0_61 = arith.constant 0 : index
    %c0_62 = arith.constant 0 : index
    %215 = vector.load %arg1[%c0_61, %c0_62] : memref<8x8xf32, #tpu.memory_space<vmem>>, vector<8x8xf32>
    %216 = arith.mulf %214, %215 : vector<8x8xf32>
    %217 = arith.addf %208, %216 : vector<8x8xf32>
    %c0_63 = arith.constant 0 : index
    %c0_64 = arith.constant 0 : index
    %218 = vector.load %arg10[%c0_63, %c0_64] : memref<8x32xf32, #tpu.memory_space<vmem>>, vector<8x32xf32>
    %cst_65 = arith.constant dense<0.000000e+00> : vector<8x32xf32>
    %219 = tpu.matmul %217, %218, %cst_65 {dimension_numbers = #tpu.dot_dimension_numbers<[1], [0], [0], [1], [0, 0, 1, 1], [], []>} : vector<8x8xf32>, vector<8x32xf32>, vector<8x32xf32> -> vector<8x32xf32>
    %c0_66 = arith.constant 0 : index
    %c0_67 = arith.constant 0 : index
    %220 = vector.load %arg11[%c0_66, %c0_67] : memref<1x32xf32, #tpu.memory_space<vmem>>, vector<1x32xf32>
    %221 = vector.broadcast %220 : vector<1x32xf32> to vector<8x32xf32>
    %222 = arith.addf %219, %221 : vector<8x32xf32>
    %223 = math.tanh %222 : vector<8x32xf32>
    %c0_68 = arith.constant 0 : index
    %c0_69 = arith.constant 0 : index
    %224 = vector.load %arg18[%c0_68, %c0_69] : memref<64x96xf32, #tpu.memory_space<vmem>>, vector<8x96xf32>
    %cst_70 = arith.constant dense<0.000000e+00> : vector<8x96xf32>
    %225 = tpu.matmul %223, %11, %cst_70 {dimension_numbers = #tpu.dot_dimension_numbers<[1], [0], [0], [1], [0, 0, 1, 1], [], []>} : vector<8x32xf32>, vector<32x96xf32>, vector<8x96xf32> -> vector<8x96xf32>
    %226 = arith.addf %225, %17 : vector<8x96xf32>
    %227 = vector.extract_strided_slice %224 {offsets = [0, 0], sizes = [8, 64], strides = [1, 1]} : vector<8x96xf32> to vector<8x64xf32>
    %228 = vector.extract_strided_slice %226 {offsets = [0, 0], sizes = [8, 64], strides = [1, 1]} : vector<8x96xf32> to vector<8x64xf32>
    %229 = arith.addf %227, %228 : vector<8x64xf32>
    %230 = arith.negf %229 : vector<8x64xf32>
    %231 = math.exp %230 : vector<8x64xf32>
    %cst_71 = arith.constant 1.000000e+00 : f32
    %232 = vector.broadcast %cst_71 : f32 to vector<8x64xf32>
    %233 = arith.addf %232, %231 : vector<8x64xf32>
    %234 = arith.divf %232, %233 : vector<8x64xf32>
    %235 = vector.extract_strided_slice %234 {offsets = [0, 0], sizes = [8, 32], strides = [1, 1]} : vector<8x64xf32> to vector<8x32xf32>
    %236 = vector.extract_strided_slice %234 {offsets = [0, 32], sizes = [8, 32], strides = [1, 1]} : vector<8x64xf32> to vector<8x32xf32>
    %237 = vector.extract_strided_slice %224 {offsets = [0, 64], sizes = [8, 32], strides = [1, 1]} : vector<8x96xf32> to vector<8x32xf32>
    %238 = vector.extract_strided_slice %226 {offsets = [0, 64], sizes = [8, 32], strides = [1, 1]} : vector<8x96xf32> to vector<8x32xf32>
    %239 = arith.mulf %235, %238 : vector<8x32xf32>
    %240 = arith.addf %237, %239 : vector<8x32xf32>
    %241 = math.tanh %240 : vector<8x32xf32>
    %cst_72 = arith.constant 1.000000e+00 : f32
    %242 = vector.broadcast %cst_72 : f32 to vector<8x32xf32>
    %243 = arith.subf %242, %236 : vector<8x32xf32>
    %244 = arith.mulf %243, %241 : vector<8x32xf32>
    %245 = arith.mulf %236, %223 : vector<8x32xf32>
    %246 = arith.addf %244, %245 : vector<8x32xf32>
    %c8_73 = arith.constant 8 : index
    %c0_74 = arith.constant 0 : index
    %247 = vector.load %arg18[%c8_73, %c0_74] : memref<64x96xf32, #tpu.memory_space<vmem>>, vector<8x96xf32>
    %cst_75 = arith.constant dense<0.000000e+00> : vector<8x96xf32>
    %248 = tpu.matmul %246, %11, %cst_75 {dimension_numbers = #tpu.dot_dimension_numbers<[1], [0], [0], [1], [0, 0, 1, 1], [], []>} : vector<8x32xf32>, vector<32x96xf32>, vector<8x96xf32> -> vector<8x96xf32>
    %249 = arith.addf %248, %17 : vector<8x96xf32>
    %250 = vector.extract_strided_slice %247 {offsets = [0, 0], sizes = [8, 64], strides = [1, 1]} : vector<8x96xf32> to vector<8x64xf32>
    %251 = vector.extract_strided_slice %249 {offsets = [0, 0], sizes = [8, 64], strides = [1, 1]} : vector<8x96xf32> to vector<8x64xf32>
    %252 = arith.addf %250, %251 : vector<8x64xf32>
    %253 = arith.negf %252 : vector<8x64xf32>
    %254 = math.exp %253 : vector<8x64xf32>
    %cst_76 = arith.constant 1.000000e+00 : f32
    %255 = vector.broadcast %cst_76 : f32 to vector<8x64xf32>
    %256 = arith.addf %255, %254 : vector<8x64xf32>
    %257 = arith.divf %255, %256 : vector<8x64xf32>
    %258 = vector.extract_strided_slice %257 {offsets = [0, 0], sizes = [8, 32], strides = [1, 1]} : vector<8x64xf32> to vector<8x32xf32>
    %259 = vector.extract_strided_slice %257 {offsets = [0, 32], sizes = [8, 32], strides = [1, 1]} : vector<8x64xf32> to vector<8x32xf32>
    %260 = vector.extract_strided_slice %247 {offsets = [0, 64], sizes = [8, 32], strides = [1, 1]} : vector<8x96xf32> to vector<8x32xf32>
    %261 = vector.extract_strided_slice %249 {offsets = [0, 64], sizes = [8, 32], strides = [1, 1]} : vector<8x96xf32> to vector<8x32xf32>
    %262 = arith.mulf %258, %261 : vector<8x32xf32>
    %263 = arith.addf %260, %262 : vector<8x32xf32>
    %264 = math.tanh %263 : vector<8x32xf32>
    %cst_77 = arith.constant 1.000000e+00 : f32
    %265 = vector.broadcast %cst_77 : f32 to vector<8x32xf32>
    %266 = arith.subf %265, %259 : vector<8x32xf32>
    %267 = arith.mulf %266, %264 : vector<8x32xf32>
    %268 = arith.mulf %259, %246 : vector<8x32xf32>
    %269 = arith.addf %267, %268 : vector<8x32xf32>
    %c16_78 = arith.constant 16 : index
    %c0_79 = arith.constant 0 : index
    %270 = vector.load %arg18[%c16_78, %c0_79] : memref<64x96xf32, #tpu.memory_space<vmem>>, vector<8x96xf32>
    %cst_80 = arith.constant dense<0.000000e+00> : vector<8x96xf32>
    %271 = tpu.matmul %269, %11, %cst_80 {dimension_numbers = #tpu.dot_dimension_numbers<[1], [0], [0], [1], [0, 0, 1, 1], [], []>} : vector<8x32xf32>, vector<32x96xf32>, vector<8x96xf32> -> vector<8x96xf32>
    %272 = arith.addf %271, %17 : vector<8x96xf32>
    %273 = vector.extract_strided_slice %270 {offsets = [0, 0], sizes = [8, 64], strides = [1, 1]} : vector<8x96xf32> to vector<8x64xf32>
    %274 = vector.extract_strided_slice %272 {offsets = [0, 0], sizes = [8, 64], strides = [1, 1]} : vector<8x96xf32> to vector<8x64xf32>
    %275 = arith.addf %273, %274 : vector<8x64xf32>
    %276 = arith.negf %275 : vector<8x64xf32>
    %277 = math.exp %276 : vector<8x64xf32>
    %cst_81 = arith.constant 1.000000e+00 : f32
    %278 = vector.broadcast %cst_81 : f32 to vector<8x64xf32>
    %279 = arith.addf %278, %277 : vector<8x64xf32>
    %280 = arith.divf %278, %279 : vector<8x64xf32>
    %281 = vector.extract_strided_slice %280 {offsets = [0, 0], sizes = [8, 32], strides = [1, 1]} : vector<8x64xf32> to vector<8x32xf32>
    %282 = vector.extract_strided_slice %280 {offsets = [0, 32], sizes = [8, 32], strides = [1, 1]} : vector<8x64xf32> to vector<8x32xf32>
    %283 = vector.extract_strided_slice %270 {offsets = [0, 64], sizes = [8, 32], strides = [1, 1]} : vector<8x96xf32> to vector<8x32xf32>
    %284 = vector.extract_strided_slice %272 {offsets = [0, 64], sizes = [8, 32], strides = [1, 1]} : vector<8x96xf32> to vector<8x32xf32>
    %285 = arith.mulf %281, %284 : vector<8x32xf32>
    %286 = arith.addf %283, %285 : vector<8x32xf32>
    %287 = math.tanh %286 : vector<8x32xf32>
    %cst_82 = arith.constant 1.000000e+00 : f32
    %288 = vector.broadcast %cst_82 : f32 to vector<8x32xf32>
    %289 = arith.subf %288, %282 : vector<8x32xf32>
    %290 = arith.mulf %289, %287 : vector<8x32xf32>
    %291 = arith.mulf %282, %269 : vector<8x32xf32>
    %292 = arith.addf %290, %291 : vector<8x32xf32>
    %c24_83 = arith.constant 24 : index
    %c0_84 = arith.constant 0 : index
    %293 = vector.load %arg18[%c24_83, %c0_84] : memref<64x96xf32, #tpu.memory_space<vmem>>, vector<8x96xf32>
    %cst_85 = arith.constant dense<0.000000e+00> : vector<8x96xf32>
    %294 = tpu.matmul %292, %11, %cst_85 {dimension_numbers = #tpu.dot_dimension_numbers<[1], [0], [0], [1], [0, 0, 1, 1], [], []>} : vector<8x32xf32>, vector<32x96xf32>, vector<8x96xf32> -> vector<8x96xf32>
    %295 = arith.addf %294, %17 : vector<8x96xf32>
    %296 = vector.extract_strided_slice %293 {offsets = [0, 0], sizes = [8, 64], strides = [1, 1]} : vector<8x96xf32> to vector<8x64xf32>
    %297 = vector.extract_strided_slice %295 {offsets = [0, 0], sizes = [8, 64], strides = [1, 1]} : vector<8x96xf32> to vector<8x64xf32>
    %298 = arith.addf %296, %297 : vector<8x64xf32>
    %299 = arith.negf %298 : vector<8x64xf32>
    %300 = math.exp %299 : vector<8x64xf32>
    %cst_86 = arith.constant 1.000000e+00 : f32
    %301 = vector.broadcast %cst_86 : f32 to vector<8x64xf32>
    %302 = arith.addf %301, %300 : vector<8x64xf32>
    %303 = arith.divf %301, %302 : vector<8x64xf32>
    %304 = vector.extract_strided_slice %303 {offsets = [0, 0], sizes = [8, 32], strides = [1, 1]} : vector<8x64xf32> to vector<8x32xf32>
    %305 = vector.extract_strided_slice %303 {offsets = [0, 32], sizes = [8, 32], strides = [1, 1]} : vector<8x64xf32> to vector<8x32xf32>
    %306 = vector.extract_strided_slice %293 {offsets = [0, 64], sizes = [8, 32], strides = [1, 1]} : vector<8x96xf32> to vector<8x32xf32>
    %307 = vector.extract_strided_slice %295 {offsets = [0, 64], sizes = [8, 32], strides = [1, 1]} : vector<8x96xf32> to vector<8x32xf32>
    %308 = arith.mulf %304, %307 : vector<8x32xf32>
    %309 = arith.addf %306, %308 : vector<8x32xf32>
    %310 = math.tanh %309 : vector<8x32xf32>
    %cst_87 = arith.constant 1.000000e+00 : f32
    %311 = vector.broadcast %cst_87 : f32 to vector<8x32xf32>
    %312 = arith.subf %311, %305 : vector<8x32xf32>
    %313 = arith.mulf %312, %310 : vector<8x32xf32>
    %314 = arith.mulf %305, %292 : vector<8x32xf32>
    %315 = arith.addf %313, %314 : vector<8x32xf32>
    %c32_88 = arith.constant 32 : index
    %c0_89 = arith.constant 0 : index
    %316 = vector.load %arg18[%c32_88, %c0_89] : memref<64x96xf32, #tpu.memory_space<vmem>>, vector<8x96xf32>
    %cst_90 = arith.constant dense<0.000000e+00> : vector<8x96xf32>
    %317 = tpu.matmul %315, %11, %cst_90 {dimension_numbers = #tpu.dot_dimension_numbers<[1], [0], [0], [1], [0, 0, 1, 1], [], []>} : vector<8x32xf32>, vector<32x96xf32>, vector<8x96xf32> -> vector<8x96xf32>
    %318 = arith.addf %317, %17 : vector<8x96xf32>
    %319 = vector.extract_strided_slice %316 {offsets = [0, 0], sizes = [8, 64], strides = [1, 1]} : vector<8x96xf32> to vector<8x64xf32>
    %320 = vector.extract_strided_slice %318 {offsets = [0, 0], sizes = [8, 64], strides = [1, 1]} : vector<8x96xf32> to vector<8x64xf32>
    %321 = arith.addf %319, %320 : vector<8x64xf32>
    %322 = arith.negf %321 : vector<8x64xf32>
    %323 = math.exp %322 : vector<8x64xf32>
    %cst_91 = arith.constant 1.000000e+00 : f32
    %324 = vector.broadcast %cst_91 : f32 to vector<8x64xf32>
    %325 = arith.addf %324, %323 : vector<8x64xf32>
    %326 = arith.divf %324, %325 : vector<8x64xf32>
    %327 = vector.extract_strided_slice %326 {offsets = [0, 0], sizes = [8, 32], strides = [1, 1]} : vector<8x64xf32> to vector<8x32xf32>
    %328 = vector.extract_strided_slice %326 {offsets = [0, 32], sizes = [8, 32], strides = [1, 1]} : vector<8x64xf32> to vector<8x32xf32>
    %329 = vector.extract_strided_slice %316 {offsets = [0, 64], sizes = [8, 32], strides = [1, 1]} : vector<8x96xf32> to vector<8x32xf32>
    %330 = vector.extract_strided_slice %318 {offsets = [0, 64], sizes = [8, 32], strides = [1, 1]} : vector<8x96xf32> to vector<8x32xf32>
    %331 = arith.mulf %327, %330 : vector<8x32xf32>
    %332 = arith.addf %329, %331 : vector<8x32xf32>
    %333 = math.tanh %332 : vector<8x32xf32>
    %cst_92 = arith.constant 1.000000e+00 : f32
    %334 = vector.broadcast %cst_92 : f32 to vector<8x32xf32>
    %335 = arith.subf %334, %328 : vector<8x32xf32>
    %336 = arith.mulf %335, %333 : vector<8x32xf32>
    %337 = arith.mulf %328, %315 : vector<8x32xf32>
    %338 = arith.addf %336, %337 : vector<8x32xf32>
    %c40_93 = arith.constant 40 : index
    %c0_94 = arith.constant 0 : index
    %339 = vector.load %arg18[%c40_93, %c0_94] : memref<64x96xf32, #tpu.memory_space<vmem>>, vector<8x96xf32>
    %cst_95 = arith.constant dense<0.000000e+00> : vector<8x96xf32>
    %340 = tpu.matmul %338, %11, %cst_95 {dimension_numbers = #tpu.dot_dimension_numbers<[1], [0], [0], [1], [0, 0, 1, 1], [], []>} : vector<8x32xf32>, vector<32x96xf32>, vector<8x96xf32> -> vector<8x96xf32>
    %341 = arith.addf %340, %17 : vector<8x96xf32>
    %342 = vector.extract_strided_slice %339 {offsets = [0, 0], sizes = [8, 64], strides = [1, 1]} : vector<8x96xf32> to vector<8x64xf32>
    %343 = vector.extract_strided_slice %341 {offsets = [0, 0], sizes = [8, 64], strides = [1, 1]} : vector<8x96xf32> to vector<8x64xf32>
    %344 = arith.addf %342, %343 : vector<8x64xf32>
    %345 = arith.negf %344 : vector<8x64xf32>
    %346 = math.exp %345 : vector<8x64xf32>
    %cst_96 = arith.constant 1.000000e+00 : f32
    %347 = vector.broadcast %cst_96 : f32 to vector<8x64xf32>
    %348 = arith.addf %347, %346 : vector<8x64xf32>
    %349 = arith.divf %347, %348 : vector<8x64xf32>
    %350 = vector.extract_strided_slice %349 {offsets = [0, 0], sizes = [8, 32], strides = [1, 1]} : vector<8x64xf32> to vector<8x32xf32>
    %351 = vector.extract_strided_slice %349 {offsets = [0, 32], sizes = [8, 32], strides = [1, 1]} : vector<8x64xf32> to vector<8x32xf32>
    %352 = vector.extract_strided_slice %339 {offsets = [0, 64], sizes = [8, 32], strides = [1, 1]} : vector<8x96xf32> to vector<8x32xf32>
    %353 = vector.extract_strided_slice %341 {offsets = [0, 64], sizes = [8, 32], strides = [1, 1]} : vector<8x96xf32> to vector<8x32xf32>
    %354 = arith.mulf %350, %353 : vector<8x32xf32>
    %355 = arith.addf %352, %354 : vector<8x32xf32>
    %356 = math.tanh %355 : vector<8x32xf32>
    %cst_97 = arith.constant 1.000000e+00 : f32
    %357 = vector.broadcast %cst_97 : f32 to vector<8x32xf32>
    %358 = arith.subf %357, %351 : vector<8x32xf32>
    %359 = arith.mulf %358, %356 : vector<8x32xf32>
    %360 = arith.mulf %351, %338 : vector<8x32xf32>
    %361 = arith.addf %359, %360 : vector<8x32xf32>
    %c48_98 = arith.constant 48 : index
    %c0_99 = arith.constant 0 : index
    %362 = vector.load %arg18[%c48_98, %c0_99] : memref<64x96xf32, #tpu.memory_space<vmem>>, vector<8x96xf32>
    %cst_100 = arith.constant dense<0.000000e+00> : vector<8x96xf32>
    %363 = tpu.matmul %361, %11, %cst_100 {dimension_numbers = #tpu.dot_dimension_numbers<[1], [0], [0], [1], [0, 0, 1, 1], [], []>} : vector<8x32xf32>, vector<32x96xf32>, vector<8x96xf32> -> vector<8x96xf32>
    %364 = arith.addf %363, %17 : vector<8x96xf32>
    %365 = vector.extract_strided_slice %362 {offsets = [0, 0], sizes = [8, 64], strides = [1, 1]} : vector<8x96xf32> to vector<8x64xf32>
    %366 = vector.extract_strided_slice %364 {offsets = [0, 0], sizes = [8, 64], strides = [1, 1]} : vector<8x96xf32> to vector<8x64xf32>
    %367 = arith.addf %365, %366 : vector<8x64xf32>
    %368 = arith.negf %367 : vector<8x64xf32>
    %369 = math.exp %368 : vector<8x64xf32>
    %cst_101 = arith.constant 1.000000e+00 : f32
    %370 = vector.broadcast %cst_101 : f32 to vector<8x64xf32>
    %371 = arith.addf %370, %369 : vector<8x64xf32>
    %372 = arith.divf %370, %371 : vector<8x64xf32>
    %373 = vector.extract_strided_slice %372 {offsets = [0, 0], sizes = [8, 32], strides = [1, 1]} : vector<8x64xf32> to vector<8x32xf32>
    %374 = vector.extract_strided_slice %372 {offsets = [0, 32], sizes = [8, 32], strides = [1, 1]} : vector<8x64xf32> to vector<8x32xf32>
    %375 = vector.extract_strided_slice %362 {offsets = [0, 64], sizes = [8, 32], strides = [1, 1]} : vector<8x96xf32> to vector<8x32xf32>
    %376 = vector.extract_strided_slice %364 {offsets = [0, 64], sizes = [8, 32], strides = [1, 1]} : vector<8x96xf32> to vector<8x32xf32>
    %377 = arith.mulf %373, %376 : vector<8x32xf32>
    %378 = arith.addf %375, %377 : vector<8x32xf32>
    %379 = math.tanh %378 : vector<8x32xf32>
    %cst_102 = arith.constant 1.000000e+00 : f32
    %380 = vector.broadcast %cst_102 : f32 to vector<8x32xf32>
    %381 = arith.subf %380, %374 : vector<8x32xf32>
    %382 = arith.mulf %381, %379 : vector<8x32xf32>
    %383 = arith.mulf %374, %361 : vector<8x32xf32>
    %384 = arith.addf %382, %383 : vector<8x32xf32>
    %c56_103 = arith.constant 56 : index
    %c0_104 = arith.constant 0 : index
    %385 = vector.load %arg18[%c56_103, %c0_104] : memref<64x96xf32, #tpu.memory_space<vmem>>, vector<8x96xf32>
    %cst_105 = arith.constant dense<0.000000e+00> : vector<8x96xf32>
    %386 = tpu.matmul %384, %11, %cst_105 {dimension_numbers = #tpu.dot_dimension_numbers<[1], [0], [0], [1], [0, 0, 1, 1], [], []>} : vector<8x32xf32>, vector<32x96xf32>, vector<8x96xf32> -> vector<8x96xf32>
    %387 = arith.addf %386, %17 : vector<8x96xf32>
    %388 = vector.extract_strided_slice %385 {offsets = [0, 0], sizes = [8, 64], strides = [1, 1]} : vector<8x96xf32> to vector<8x64xf32>
    %389 = vector.extract_strided_slice %387 {offsets = [0, 0], sizes = [8, 64], strides = [1, 1]} : vector<8x96xf32> to vector<8x64xf32>
    %390 = arith.addf %388, %389 : vector<8x64xf32>
    %391 = arith.negf %390 : vector<8x64xf32>
    %392 = math.exp %391 : vector<8x64xf32>
    %cst_106 = arith.constant 1.000000e+00 : f32
    %393 = vector.broadcast %cst_106 : f32 to vector<8x64xf32>
    %394 = arith.addf %393, %392 : vector<8x64xf32>
    %395 = arith.divf %393, %394 : vector<8x64xf32>
    %396 = vector.extract_strided_slice %395 {offsets = [0, 0], sizes = [8, 32], strides = [1, 1]} : vector<8x64xf32> to vector<8x32xf32>
    %397 = vector.extract_strided_slice %395 {offsets = [0, 32], sizes = [8, 32], strides = [1, 1]} : vector<8x64xf32> to vector<8x32xf32>
    %398 = vector.extract_strided_slice %385 {offsets = [0, 64], sizes = [8, 32], strides = [1, 1]} : vector<8x96xf32> to vector<8x32xf32>
    %399 = vector.extract_strided_slice %387 {offsets = [0, 64], sizes = [8, 32], strides = [1, 1]} : vector<8x96xf32> to vector<8x32xf32>
    %400 = arith.mulf %396, %399 : vector<8x32xf32>
    %401 = arith.addf %398, %400 : vector<8x32xf32>
    %402 = math.tanh %401 : vector<8x32xf32>
    %cst_107 = arith.constant 1.000000e+00 : f32
    %403 = vector.broadcast %cst_107 : f32 to vector<8x32xf32>
    %404 = arith.subf %403, %397 : vector<8x32xf32>
    %405 = arith.mulf %404, %402 : vector<8x32xf32>
    %406 = arith.mulf %397, %384 : vector<8x32xf32>
    %407 = arith.addf %405, %406 : vector<8x32xf32>
    %408 = tpu.concatenate %246, %269, %292, %315, %338, %361, %384, %407 in 0 : vector<8x32xf32>, vector<8x32xf32>, vector<8x32xf32>, vector<8x32xf32>, vector<8x32xf32>, vector<8x32xf32>, vector<8x32xf32>, vector<8x32xf32> -> vector<64x32xf32>
    %c0_108 = arith.constant 0 : index
    %c0_109 = arith.constant 0 : index
    %409 = vector.load %arg12[%c0_108, %c0_109] : memref<32x4xf32, #tpu.memory_space<vmem>>, vector<32x4xf32>
    %cst_110 = arith.constant dense<0.000000e+00> : vector<64x4xf32>
    %410 = tpu.matmul %408, %409, %cst_110 {dimension_numbers = #tpu.dot_dimension_numbers<[1], [0], [0], [1], [0, 0, 1, 1], [], []>} : vector<64x32xf32>, vector<32x4xf32>, vector<64x4xf32> -> vector<64x4xf32>
    %c0_111 = arith.constant 0 : index
    %c0_112 = arith.constant 0 : index
    %411 = vector.load %arg13[%c0_111, %c0_112] : memref<1x4xf32, #tpu.memory_space<vmem>>, vector<1x4xf32>
    %412 = vector.broadcast %411 : vector<1x4xf32> to vector<64x4xf32>
    %413 = arith.addf %410, %412 : vector<64x4xf32>
    %c0_113 = arith.constant 0 : index
    %c0_114 = arith.constant 0 : index
    %414 = vector.load %arg14[%c0_113, %c0_114] : memref<64x4xf32, #tpu.memory_space<vmem>>, vector<64x4xf32>
    tpu.vector_store %arg14[%c0_113, %c0_114], %413 {strides = array<i32>} : memref<64x4xf32, #tpu.memory_space<vmem>>, vector<64x4xf32>,
    return
  }
}

</mosaic_0001>

<llo_original>
// kernel: error_vae_forward.1
$region0: #{error_vae_forward.1}
  #allocation0 [shape = 'u32[]', space=smem, size = 0x4, offset = 0x4, fixed_abs, tag = 'smem constant byte address 0x4 - core index']
  #allocation1 [shape = 'u32[144,128]{1,0:T(1,128)}', space=vmem, size = 0x12000, scoped, tag = 'internal scratch']
  #allocation2 [shape = 'f32[64,96]{1,0:T(8,128)}', space=vmem, size = 0x8000, scoped, tag = 'scratch operand']
  #allocation3 [shape = 'f32[64,96]{1,0:T(8,128)}', space=vmem, size = 0x8000, scoped, tag = 'scratch operand']
  %s0 = inlined_call_operand.vmem [shape: f32[64,4], index: 0, kind: input, shape index: {}]
  %s1 = inlined_call_operand.vmem [shape: f32[8,8], index: 1, kind: input, shape index: {}]
  %s2 = inlined_call_operand.vmem [shape: f32[4,192], index: 2, kind: input, shape index: {}]
  %s3 = inlined_call_operand.vmem [shape: f32[1,192], index: 3, kind: input, shape index: {}]
  %s4 = inlined_call_operand.vmem [shape: f32[32,96], index: 4, kind: input, shape index: {}]
  %s5 = inlined_call_operand.vmem [shape: f32[1,96], index: 5, kind: input, shape index: {}]
  %s6 = inlined_call_operand.vmem [shape: f32[32,96], index: 6, kind: input, shape index: {}]
  %s7 = inlined_call_operand.vmem [shape: f32[1,96], index: 7, kind: input, shape index: {}]
  %s8 = inlined_call_operand.vmem [shape: f32[32,16], index: 8, kind: input, shape index: {}]
  %s9 = inlined_call_operand.vmem [shape: f32[1,16], index: 9, kind: input, shape index: {}]
  %s10 = inlined_call_operand.vmem [shape: f32[8,32], index: 10, kind: input, shape index: {}]
  %s11 = inlined_call_operand.vmem [shape: f32[1,32], index: 11, kind: input, shape index: {}]
  %s12 = inlined_call_operand.vmem [shape: f32[32,4], index: 12, kind: input, shape index: {}]
  %s13 = inlined_call_operand.vmem [shape: f32[1,4], index: 13, kind: input, shape index: {}]
  %s14 = inlined_call_operand.vmem [shape: f32[64,4], index: 14, kind: output, shape index: {0}]
  %s15 = inlined_call_operand.vmem [shape: f32[8,8], index: 15, kind: output, shape index: {1}]
  %s16 = inlined_call_operand.vmem [shape: f32[8,8], index: 16, kind: output, shape index: {2}]
  %17 = xla_tuple %s14, %s15, %s16
  %s18 = sld [smem:[#allocation0]]
  $region82: #{error_vae_forward.1} parent=0
    _
  %s20 = ssub.s32 1, %s18
  %s21 = scalar_select 0, %s20, %s18
  // Predicated region
  $region2: #{error_vae_forward.1} parent=0 // pred_check
    _
  $region3: #{error_vae_forward.1} parent=0 // pred_check_branch
    %23 = sbr.rel (0) target = $region5
  $region4: #{error_vae_forward.1} parent=0 // pred_region
    _
  $region5: #{error_vae_forward.1} parent=0 // pred_fallthru
    _
  // Predicated region
  $region6: #{error_vae_forward.1} parent=0 // pred_check
    _
  $region7: #{error_vae_forward.1} parent=0 // pred_check_branch
    %25 = sbr.rel (0) target = $region9
  $region8: #{error_vae_forward.1} parent=0 // pred_region
    _
  $region9: #{error_vae_forward.1} parent=0 // pred_fallthru
    _
  // Predicated region
  $region10: #{error_vae_forward.1} parent=0 // pred_check
    _
  $region11: #{error_vae_forward.1} parent=0 // pred_check_branch
    %27 = sbr.rel (0) target = $region13
  $region12: #{error_vae_forward.1} parent=0 // pred_region
    _
  $region13: #{error_vae_forward.1} parent=0 // pred_fallthru
    _
  // Predicated region
  $region14: #{error_vae_forward.1} parent=0 // pred_check
    _
  $region15: #{error_vae_forward.1} parent=0 // pred_check_branch
    %29 = sbr.rel (0) target = $region17
  $region16: #{error_vae_forward.1} parent=0 // pred_region
    _
  $region17: #{error_vae_forward.1} parent=0 // pred_fallthru
    _
  // Predicated region
  $region18: #{error_vae_forward.1} parent=0 // pred_check
    _
  $region19: #{error_vae_forward.1} parent=0 // pred_check_branch
    %31 = sbr.rel (0) target = $region21
  $region20: #{error_vae_forward.1} parent=0 // pred_region
    _
  $region21: #{error_vae_forward.1} parent=0 // pred_fallthru
    _
  // Predicated region
  $region22: #{error_vae_forward.1} parent=0 // pred_check
    _
  $region23: #{error_vae_forward.1} parent=0 // pred_check_branch
    %33 = sbr.rel (0) target = $region25
  $region24: #{error_vae_forward.1} parent=0 // pred_region
    _
  $region25: #{error_vae_forward.1} parent=0 // pred_fallthru
    _
  // Predicated region
  $region26: #{error_vae_forward.1} parent=0 // pred_check
    _
  $region27: #{error_vae_forward.1} parent=0 // pred_check_branch
    %35 = sbr.rel (0) target = $region29
  $region28: #{error_vae_forward.1} parent=0 // pred_region
    _
  $region29: #{error_vae_forward.1} parent=0 // pred_fallthru
    _
  // Predicated region
  $region30: #{error_vae_forward.1} parent=0 // pred_check
    _
  $region31: #{error_vae_forward.1} parent=0 // pred_check_branch
    %37 = sbr.rel (0) target = $region33
  $region32: #{error_vae_forward.1} parent=0 // pred_region
    _
  $region33: #{error_vae_forward.1} parent=0 // pred_fallthru
    _
  // Predicated region
  $region34: #{error_vae_forward.1} parent=0 // pred_check
    _
  $region35: #{error_vae_forward.1} parent=0 // pred_check_branch
    %39 = sbr.rel (0) target = $region37
  $region36: #{error_vae_forward.1} parent=0 // pred_region
    _
  $region37: #{error_vae_forward.1} parent=0 // pred_fallthru
    _
  // Predicated region
  $region38: #{error_vae_forward.1} parent=0 // pred_check
    _
  $region39: #{error_vae_forward.1} parent=0 // pred_check_branch
    %41 = sbr.rel (0) target = $region41
  $region40: #{error_vae_forward.1} parent=0 // pred_region
    _
  $region41: #{error_vae_forward.1} parent=0 // pred_fallthru
    _
  // Predicated region
  $region42: #{error_vae_forward.1} parent=0 // pred_check
    _
  $region43: #{error_vae_forward.1} parent=0 // pred_check_branch
    %43 = sbr.rel (0) target = $region45
  $region44: #{error_vae_forward.1} parent=0 // pred_region
    _
  $region45: #{error_vae_forward.1} parent=0 // pred_fallthru
    _
  // Predicated region
  $region46: #{error_vae_forward.1} parent=0 // pred_check
    _
  $region47: #{error_vae_forward.1} parent=0 // pred_check_branch
    %45 = sbr.rel (0) target = $region49
  $region48: #{error_vae_forward.1} parent=0 // pred_region
    _
  $region49: #{error_vae_forward.1} parent=0 // pred_fallthru
    _
  // Predicated region
  $region50: #{error_vae_forward.1} parent=0 // pred_check
    _
  $region51: #{error_vae_forward.1} parent=0 // pred_check_branch
    %47 = sbr.rel (0) target = $region53
  $region52: #{error_vae_forward.1} parent=0 // pred_region
    _
  $region53: #{error_vae_forward.1} parent=0 // pred_fallthru
    _
  // Predicated region
  $region54: #{error_vae_forward.1} parent=0 // pred_check
    _
  $region55: #{error_vae_forward.1} parent=0 // pred_check_branch
    %49 = sbr.rel (0) target = $region57
  $region56: #{error_vae_forward.1} parent=0 // pred_region
    _
  $region57: #{error_vae_forward.1} parent=0 // pred_fallthru
    _
  %v50 = vld [vmem:[%s0] sm:$0xff]
  %v51 = vld [vmem:[%s0 + $0x8] sm:$0xff]
  %v52 = vld [vmem:[%s0 + $0x10] sm:$0xff]
  %v53 = vld [vmem:[%s0 + $0x18] sm:$0xff]
  %v54 = vld [vmem:[%s0 + $0x20] sm:$0xff]
  %v55 = vld [vmem:[%s0 + $0x28] sm:$0xff]
  %v56 = vld [vmem:[%s0 + $0x30] sm:$0xff]
  %v57 = vld [vmem:[%s0 + $0x38] sm:$0xff]
  %v58 = vld [vmem:[%s2] sm:$0xff]
  %v59 = vld [vmem:[%s3] sm:$0x3]
  %v61 = vlaneseq
  %v62 = vshrl.u32 %v61, 7
  %v63 = vsub.s32 0, %v62
  %v64 = vrot.slane %v59, %v63
  %v65 = vlaneseq
  %v66 = vshrl.u32 %v65, 7
  %v67 = vsub.s32 1, %v66
  %v68 = vrot.slane %v59, %v67
  %v72 = vcombine.high %v58, %v58
  %vm73 = vcmask 31744
  %v75 = vsel %vm73, %v50, 0
  %v78 = vsel %vm73, %v51, 0
  %v81 = vsel %vm73, %v52, 0
  %v84 = vsel %vm73, %v53, 0
  %v87 = vsel %vm73, %v54, 0
  %v90 = vsel %vm73, %v55, 0
  %v93 = vsel %vm73, %v56, 0
  %v96 = vsel %vm73, %v57, 0
  %vm98 = vcmask 1043456
  %v99 = vsel %vm98, %v58, 0
  %v101 = vsel %vm98, %v72, 0
  %103 = vmatprep.subr.mxu0 0.0
  %104 = vmatpush1.msra.mxu0 0.0
  %105 = vmatprep.subr.mxu0 0.0
  %106 = vmatpush1.msra.mxu0 0.0
  %107 = vmatprep.subr.mxu0 0.0
  %108 = vmatpush1.msra.mxu0 0.0
  %109 = vmatprep.subr.mxu0 0.0
  %110 = vmatpush1.msra.mxu0 0.0
  %111 = vmatprep.subr.mxu0 0.0
  %112 = vmatpush1.msra.mxu0 0.0
  %113 = vmatprep.subr.mxu0 0.0
  %114 = vmatpush1.msra.mxu0 0.0
  %115 = vmatprep.subr.mxu0 0.0
  %116 = vmatpush1.msra.mxu0 0.0
  %117 = vmatprep.subr.mxu0 0.0
  %118 = vmatpush1.msra.mxu0 0.0
  %119 = vmatprep.subr.mxu0 0.0
  %120 = vmatpush1.msra.mxu0 0.0
  %121 = vmatprep.subr.mxu0 0.0
  %122 = vmatpush1.msra.mxu0 0.0
  %123 = vmatprep.subr.mxu0 0.0
  %124 = vmatpush1.msra.mxu0 0.0
  %125 = vmatprep.subr.mxu0 0.0
  %126 = vmatpush1.msra.mxu0 0.0
  %127 = vmatprep.subr.mxu0 0.0
  %128 = vmatpush1.msra.mxu0 0.0
  %129 = vmatprep.subr.mxu0 0.0
  %130 = vmatpush1.msra.mxu0 0.0
  %131 = vmatprep.subr.mxu0 0.0
  %132 = vmatpush1.msra.mxu0 0.0
  %133 = vmatprep.subr.mxu0 %v101
  %134 = vmatpush1.msra.mxu0 %v99
  %135 = vmatprep.subr.mxu0 0.0
  %136 = vmatpush2.msra.mxu0 0.0
  %137 = vmatprep.subr.mxu0 0.0
  %138 = vmatpush2.msra.mxu0 0.0
  %139 = vmatprep.subr.mxu0 0.0
  %140 = vmatpush2.msra.mxu0 0.0
  %141 = vmatprep.subr.mxu0 0.0
  %142 = vmatpush2.msra.mxu0 0.0
  %143 = vmatprep.subr.mxu0 0.0
  %144 = vmatpush2.msra.mxu0 0.0
  %145 = vmatprep.subr.mxu0 0.0
  %146 = vmatpush2.msra.mxu0 0.0
  %147 = vmatprep.subr.mxu0 0.0
  %148 = vmatpush2.msra.mxu0 0.0
  %149 = vmatprep.subr.mxu0 0.0
  %150 = vmatpush2.msra.mxu0 0.0
  %151 = vmatprep.subr.mxu0 0.0
  %152 = vmatpush2.msra.mxu0 0.0
  %153 = vmatprep.subr.mxu0 0.0
  %154 = vmatpush2.msra.mxu0 0.0
  %155 = vmatprep.subr.mxu0 0.0
  %156 = vmatpush2.msra.mxu0 0.0
  %157 = vmatprep.subr.mxu0 0.0
  %158 = vmatpush2.msra.mxu0 0.0
  %159 = vmatprep.subr.mxu0 0.0
  %160 = vmatpush2.msra.mxu0 0.0
  %161 = vmatprep.subr.mxu0 0.0
  %162 = vmatpush2.msra.mxu0 0.0
  %163 = vmatprep.subr.mxu0 0.0
  %164 = vmatpush2.msra.mxu0 0.0
  %165 = vmatprep.subr.mxu0 0.0
  %166 = vmatpush2.msra.mxu0 0.0
  %167 = vmatprep.mubr.f32.mxu0 0.0
  %168 = vmatmul.mubr.f32.gmra.mxu0 %v75
  %v169 = vpop.f32.mrf.mxu0
  %v170 = vadd.f32 %v64, %v169
  %v171 = vpop.f32.mrf.mxu0
  %v172 = vadd.f32 %v68, %v171
  %173 = vmatprep.mubr.f32.mxu0 0.0
  %174 = vmatmul.mubr.f32.gmra.mxu0 %v78
  %v175 = vpop.f32.mrf.mxu0
  %v176 = vadd.f32 %v64, %v175
  %v177 = vpop.f32.mrf.mxu0
  %v178 = vadd.f32 %v68, %v177
  %179 = vmatprep.mubr.f32.mxu0 0.0
  %180 = vmatmul.mubr.f32.gmra.mxu0 %v81
  %v181 = vpop.f32.mrf.mxu0
  %v182 = vadd.f32 %v64, %v181
  %v183 = vpop.f32.mrf.mxu0
  %v184 = vadd.f32 %v68, %v183
  %185 = vmatprep.mubr.f32.mxu0 0.0
  %186 = vmatmul.mubr.f32.gmra.mxu0 %v84
  %v187 = vpop.f32.mrf.mxu0
  %v188 = vadd.f32 %v64, %v187
  %v189 = vpop.f32.mrf.mxu0
  %v190 = vadd.f32 %v68, %v189
  %191 = vmatprep.mubr.f32.mxu0 0.0
  %192 = vmatmul.mubr.f32.gmra.mxu0 %v87
  %v193 = vpop.f32.mrf.mxu0
  %v194 = vadd.f32 %v64, %v193
  %v195 = vpop.f32.mrf.mxu0
  %v196 = vadd.f32 %v68, %v195
  %197 = vmatprep.mubr.f32.mxu0 0.0
  %198 = vmatmul.mubr.f32.gmra.mxu0 %v90
  %v199 = vpop.f32.mrf.mxu0
  %v200 = vadd.f32 %v64, %v199
  %v201 = vpop.f32.mrf.mxu0
  %v202 = vadd.f32 %v68, %v201
  %203 = vmatprep.mubr.f32.mxu0 0.0
  %204 = vmatmul.mubr.f32.gmra.mxu0 %v93
  %v205 = vpop.f32.mrf.mxu0
  %v206 = vadd.f32 %v64, %v205
  %v207 = vpop.f32.mrf.mxu0
  %v208 = vadd.f32 %v68, %v207
  %209 = vmatprep.mubr.f32.mxu0 0.0
  %210 = vmatmul.mubr.f32.gmra.mxu0 %v96
  %v211 = vpop.f32.mrf.mxu0
  %v212 = vadd.f32 %v64, %v211
  %v213 = vpop.f32.mrf.mxu0
  %v214 = vadd.f32 %v68, %v213
  %215 = vdwg.mxu0
  %vm216 = vcmask 785408
  %217 = vst.msk [vmem:[#allocation2] sm:$0xff] %vm216, %v170
  %218 = vst.msk [vmem:[#allocation2 + $0x8] sm:$0xff] %vm216, %v176
  %219 = vst.msk [vmem:[#allocation2 + $0x10] sm:$0xff] %vm216, %v182
  %220 = vst.msk [vmem:[#allocation2 + $0x18] sm:$0xff] %vm216, %v188
  %221 = vst.msk [vmem:[#allocation2 + $0x20] sm:$0xff] %vm216, %v194
  %222 = vst.msk [vmem:[#allocation2 + $0x28] sm:$0xff] %vm216, %v200
  %223 = vst.msk [vmem:[#allocation2 + $0x30] sm:$0xff] %vm216, %v206
  %224 = vst.msk [vmem:[#allocation2 + $0x38] sm:$0xff] %vm216, %v212
  %241 = vrot.lane.b32.xlu0 %v170, 32
  %v242 = vpop.permute.xlu0 %241
  %243 = vrot.lane.b32.xlu0 %v172, 32
  %v244 = vpop.permute.xlu0 %243
  %245 = vrot.lane.b32.xlu0 %v176, 32
  %v246 = vpop.permute.xlu0 %245
  %247 = vrot.lane.b32.xlu0 %v178, 32
  %v248 = vpop.permute.xlu0 %247
  %249 = vrot.lane.b32.xlu0 %v182, 32
  %v250 = vpop.permute.xlu0 %249
  %251 = vrot.lane.b32.xlu0 %v184, 32
  %v252 = vpop.permute.xlu0 %251
  %253 = vrot.lane.b32.xlu0 %v188, 32
  %v254 = vpop.permute.xlu0 %253
  %255 = vrot.lane.b32.xlu0 %v190, 32
  %v256 = vpop.permute.xlu0 %255
  %257 = vrot.lane.b32.xlu0 %v194, 32
  %v258 = vpop.permute.xlu0 %257
  %259 = vrot.lane.b32.xlu0 %v196, 32
  %v260 = vpop.permute.xlu0 %259
  %261 = vrot.lane.b32.xlu0 %v200, 32
  %v262 = vpop.permute.xlu0 %261
  %263 = vrot.lane.b32.xlu0 %v202, 32
  %v264 = vpop.permute.xlu0 %263
  %265 = vrot.lane.b32.xlu0 %v206, 32
  %v266 = vpop.permute.xlu0 %265
  %267 = vrot.lane.b32.xlu0 %v208, 32
  %v268 = vpop.permute.xlu0 %267
  %269 = vrot.lane.b32.xlu0 %v212, 32
  %v270 = vpop.permute.xlu0 %269
  %271 = vrot.lane.b32.xlu0 %v214, 32
  %v272 = vpop.permute.xlu0 %271
  %vm273 = vcmask 261120
  %v274 = vsel %vm273, %v242, %v244
  %v275 = vsel %vm273, %v246, %v248
  %v276 = vsel %vm273, %v250, %v252
  %v277 = vsel %vm273, %v254, %v256
  %v278 = vsel %vm273, %v258, %v260
  %v279 = vsel %vm273, %v262, %v264
  %v280 = vsel %vm273, %v266, %v268
  %v281 = vsel %vm273, %v270, %v272
  %290 = vst.msk [vmem:[#allocation3] sm:$0xff] %vm216, %v274
  %291 = vst.msk [vmem:[#allocation3 + $0x8] sm:$0xff] %vm216, %v275
  %292 = vst.msk [vmem:[#allocation3 + $0x10] sm:$0xff] %vm216, %v276
  %293 = vst.msk [vmem:[#allocation3 + $0x18] sm:$0xff] %vm216, %v277
  %294 = vst.msk [vmem:[#allocation3 + $0x20] sm:$0xff] %vm216, %v278
  %295 = vst.msk [vmem:[#allocation3 + $0x28] sm:$0xff] %vm216, %v279
  %296 = vst.msk [vmem:[#allocation3 + $0x30] sm:$0xff] %vm216, %v280
  %297 = vst.msk [vmem:[#allocation3 + $0x38] sm:$0xff] %vm216, %v281
  %v298 = vld [vmem:[%s4] sm:$0xff]
  %v299 = vld [vmem:[%s4 + $0x8] sm:$0xff]
  %v300 = vld [vmem:[%s4 + $0x10] sm:$0xff]
  %v301 = vld [vmem:[%s4 + $0x18] sm:$0xff]
  %v302 = vld [vmem:[%s6] sm:$0xff]
  %v303 = vld [vmem:[%s6 + $0x8] sm:$0xff]
  %v304 = vld [vmem:[%s6 + $0x10] sm:$0xff]
  %v305 = vld [vmem:[%s6 + $0x18] sm:$0xff]
  %v306 = vld [vmem:[%s5] sm:$0x1]
  %v308 = vlaneseq
  %v309 = vshrl.u32 %v308, 7
  %v310 = vsub.s32 0, %v309
  %v311 = vrot.slane %v306, %v310
  %v313 = vld [vmem:[%s7] sm:$0x1]
  %v315 = vlaneseq
  %v316 = vshrl.u32 %v315, 7
  %v317 = vsub.s32 0, %v316
  %v318 = vrot.slane %v313, %v317
  %v320 = vld [vmem:[#allocation2] sm:$0xff]
  %v322 = vsel %vm273, 0.0, 0
  %324 = vmatprep.subr.mxu0 0.0
  %325 = vmatpush1.msra.mxu0 0.0
  %326 = vmatprep.subr.mxu0 0.0
  %327 = vmatpush1.msra.mxu0 0.0
  %328 = vmatprep.subr.mxu0 0.0
  %329 = vmatpush1.msra.mxu0 0.0
  %330 = vmatprep.subr.mxu0 0.0
  %331 = vmatpush1.msra.mxu0 0.0
  %332 = vmatprep.subr.mxu0 0.0
  %333 = vmatpush1.msra.mxu0 0.0
  %334 = vmatprep.subr.mxu0 0.0
  %335 = vmatpush1.msra.mxu0 0.0
  %336 = vmatprep.subr.mxu0 0.0
  %337 = vmatpush1.msra.mxu0 0.0
  %338 = vmatprep.subr.mxu0 0.0
  %339 = vmatpush1.msra.mxu0 0.0
  %340 = vmatprep.subr.mxu0 0.0
  %341 = vmatpush1.msra.mxu0 0.0
  %342 = vmatprep.subr.mxu0 0.0
  %343 = vmatpush1.msra.mxu0 0.0
  %344 = vmatprep.subr.mxu0 0.0
  %345 = vmatpush1.msra.mxu0 0.0
  %346 = vmatprep.subr.mxu0 0.0
  %347 = vmatpush1.msra.mxu0 0.0
  %348 = vmatprep.subr.mxu0 0.0
  %349 = vmatpush1.msra.mxu0 %v301
  %350 = vmatprep.subr.mxu0 0.0
  %351 = vmatpush1.msra.mxu0 %v300
  %352 = vmatprep.subr.mxu0 0.0
  %353 = vmatpush1.msra.mxu0 %v299
  %354 = vmatprep.subr.mxu0 0.0
  %355 = vmatpush1.msra.mxu0 %v298
  %356 = vmatprep.subr.mxu0 0.0
  %357 = vmatpush2.msra.mxu0 0.0
  %358 = vmatprep.subr.mxu0 0.0
  %359 = vmatpush2.msra.mxu0 0.0
  %360 = vmatprep.subr.mxu0 0.0
  %361 = vmatpush2.msra.mxu0 0.0
  %362 = vmatprep.subr.mxu0 0.0
  %363 = vmatpush2.msra.mxu0 0.0
  %364 = vmatprep.subr.mxu0 0.0
  %365 = vmatpush2.msra.mxu0 0.0
  %366 = vmatprep.subr.mxu0 0.0
  %367 = vmatpush2.msra.mxu0 0.0
  %368 = vmatprep.subr.mxu0 0.0
  %369 = vmatpush2.msra.mxu0 0.0
  %370 = vmatprep.subr.mxu0 0.0
  %371 = vmatpush2.msra.mxu0 0.0
  %372 = vmatprep.subr.mxu0 0.0
  %373 = vmatpush2.msra.mxu0 0.0
  %374 = vmatprep.subr.mxu0 0.0
  %375 = vmatpush2.msra.mxu0 0.0
  %376 = vmatprep.subr.mxu0 0.0
  %377 = vmatpush2.msra.mxu0 0.0
  %378 = vmatprep.subr.mxu0 0.0
  %379 = vmatpush2.msra.mxu0 0.0
  %380 = vmatprep.subr.mxu0 0.0
  %381 = vmatpush2.msra.mxu0 0.0
  %382 = vmatprep.subr.mxu0 0.0
  %383 = vmatpush2.msra.mxu0 0.0
  %384 = vmatprep.subr.mxu0 0.0
  %385 = vmatpush2.msra.mxu0 0.0
  %386 = vmatprep.subr.mxu0 0.0
  %387 = vmatpush2.msra.mxu0 0.0
  %388 = vmatprep.mubr.f32.mxu0 0.0
  %389 = vmatmul.mubr.f32.gmra.mxu0 %v322
  %v390 = vpop.f32.mrf.mxu0
  %v391 = vadd.f32 %v311, %v390
  %v392 = vpop.f32.mrf.mxu0
  %393 = vdwg.mxu0
  %v394 = vadd.f32 %v320, %v391
  %v395 = vxor.u32 %v394, 2147483648
  %v396 = vmul.f32 %v395, 1.442695
  %v397 = vpow.pop %v396
  %v398 = vadd.f32 %v397, 1.0
  %v399 = vrcp.pop %v398
  %v400 = vmul.f32 1.0, %v399
  %402 = vrot.lane.b32.xlu0 %v391, 64
  %v403 = vpop.permute.xlu0 %402
  %v405 = vmul.f32 %v400, %v403
  %407 = vrot.lane.b32.xlu0 %v405, 64
  %v408 = vpop.permute.xlu0 %407
  %v410 = vadd.f32 %v320, %v408
  %v411 = vtanh.pop %v410
  %v412 = vsub.f32 1.0, %v400
  %414 = vrot.lane.b32.xlu0 %v411, 96
  %v415 = vpop.permute.xlu0 %414
  %v417 = vmul.f32 %v412, %v415
  %v418 = vmul.f32 %v400, 0.0
  %v419 = vadd.f32 %v417, %v418
  %v420 = vld [vmem:[#allocation2 + $0x8] sm:$0xff]
  %422 = vrot.lane.b32.xlu0 %v419, 96
  %v423 = vpop.permute.xlu0 %422
  %v424 = vsel %vm273, %v423, 0
  %426 = vmatprep.subr.mxu0 0.0
  %427 = vmatpush1.msra.mxu0 0.0
  %428 = vmatprep.subr.mxu0 0.0
  %429 = vmatpush1.msra.mxu0 0.0
  %430 = vmatprep.subr.mxu0 0.0
  %431 = vmatpush1.msra.mxu0 0.0
  %432 = vmatprep.subr.mxu0 0.0
  %433 = vmatpush1.msra.mxu0 0.0
  %434 = vmatprep.subr.mxu0 0.0
  %435 = vmatpush1.msra.mxu0 0.0
  %436 = vmatprep.subr.mxu0 0.0
  %437 = vmatpush1.msra.mxu0 0.0
  %438 = vmatprep.subr.mxu0 0.0
  %439 = vmatpush1.msra.mxu0 0.0
  %440 = vmatprep.subr.mxu0 0.0
  %441 = vmatpush1.msra.mxu0 0.0
  %442 = vmatprep.subr.mxu0 0.0
  %443 = vmatpush1.msra.mxu0 0.0
  %444 = vmatprep.subr.mxu0 0.0
  %445 = vmatpush1.msra.mxu0 0.0
  %446 = vmatprep.subr.mxu0 0.0
  %447 = vmatpush1.msra.mxu0 0.0
  %448 = vmatprep.subr.mxu0 0.0
  %449 = vmatpush1.msra.mxu0 0.0
  %450 = vmatprep.subr.mxu0 0.0
  %451 = vmatpush1.msra.mxu0 %v301
  %452 = vmatprep.subr.mxu0 0.0
  %453 = vmatpush1.msra.mxu0 %v300
  %454 = vmatprep.subr.mxu0 0.0
  %455 = vmatpush1.msra.mxu0 %v299
  %456 = vmatprep.subr.mxu0 0.0
  %457 = vmatpush1.msra.mxu0 %v298
  %458 = vmatprep.subr.mxu0 0.0
  %459 = vmatpush2.msra.mxu0 0.0
  %460 = vmatprep.subr.mxu0 0.0
  %461 = vmatpush2.msra.mxu0 0.0
  %462 = vmatprep.subr.mxu0 0.0
  %463 = vmatpush2.msra.mxu0 0.0
  %464 = vmatprep.subr.mxu0 0.0
  %465 = vmatpush2.msra.mxu0 0.0
  %466 = vmatprep.subr.mxu0 0.0
  %467 = vmatpush2.msra.mxu0 0.0
  %468 = vmatprep.subr.mxu0 0.0
  %469 = vmatpush2.msra.mxu0 0.0
  %470 = vmatprep.subr.mxu0 0.0
  %471 = vmatpush2.msra.mxu0 0.0
  %472 = vmatprep.subr.mxu0 0.0
  %473 = vmatpush2.msra.mxu0 0.0
  %474 = vmatprep.subr.mxu0 0.0
  %475 = vmatpush2.msra.mxu0 0.0
  %476 = vmatprep.subr.mxu0 0.0
  %477 = vmatpush2.msra.mxu0 0.0
  %478 = vmatprep.subr.mxu0 0.0
  %479 = vmatpush2.msra.mxu0 0.0
  %480 = vmatprep.subr.mxu0 0.0
  %481 = vmatpush2.msra.mxu0 0.0
  %482 = vmatprep.subr.mxu0 0.0
  %483 = vmatpush2.msra.mxu0 0.0
  %484 = vmatprep.subr.mxu0 0.0
  %485 = vmatpush2.msra.mxu0 0.0
  %486 = vmatprep.subr.mxu0 0.0
  %487 = vmatpush2.msra.mxu0 0.0
  %488 = vmatprep.subr.mxu0 0.0
  %489 = vmatpush2.msra.mxu0 0.0
  %490 = vmatprep.mubr.f32.mxu0 0.0
  %491 = vmatmul.mubr.f32.gmra.mxu0 %v424
  %v492 = vpop.f32.mrf.mxu0
  %v493 = vadd.f32 %v311, %v492
  %v494 = vpop.f32.mrf.mxu0
  %495 = vdwg.mxu0
  %v496 = vadd.f32 %v420, %v493
  %v497 = vxor.u32 %v496, 2147483648
  %v498 = vmul.f32 %v497, 1.442695
  %v499 = vpow.pop %v498
  %v500 = vadd.f32 %v499, 1.0
  %v501 = vrcp.pop %v500
  %v502 = vmul.f32 1.0, %v501
  %504 = vrot.lane.b32.xlu0 %v493, 64
  %v505 = vpop.permute.xlu0 %504
  %v507 = vmul.f32 %v502, %v505
  %509 = vrot.lane.b32.xlu0 %v507, 64
  %v510 = vpop.permute.xlu0 %509
  %v512 = vadd.f32 %v420, %v510
  %v513 = vtanh.pop %v512
  %v514 = vsub.f32 1.0, %v502
  %516 = vrot.lane.b32.xlu0 %v513, 96
  %v517 = vpop.permute.xlu0 %516
  %v519 = vmul.f32 %v514, %v517
  %v520 = vmul.f32 %v502, %v419
  %v521 = vadd.f32 %v519, %v520
  %v522 = vld [vmem:[#allocation2 + $0x10] sm:$0xff]
  %524 = vrot.lane.b32.xlu0 %v521, 96
  %v525 = vpop.permute.xlu0 %524
  %v526 = vsel %vm273, %v525, 0
  %528 = vmatprep.subr.mxu0 0.0
  %529 = vmatpush1.msra.mxu0 0.0
  %530 = vmatprep.subr.mxu0 0.0
  %531 = vmatpush1.msra.mxu0 0.0
  %532 = vmatprep.subr.mxu0 0.0
  %533 = vmatpush1.msra.mxu0 0.0
  %534 = vmatprep.subr.mxu0 0.0
  %535 = vmatpush1.msra.mxu0 0.0
  %536 = vmatprep.subr.mxu0 0.0
  %537 = vmatpush1.msra.mxu0 0.0
  %538 = vmatprep.subr.mxu0 0.0
  %539 = vmatpush1.msra.mxu0 0.0
  %540 = vmatprep.subr.mxu0 0.0
  %541 = vmatpush1.msra.mxu0 0.0
  %542 = vmatprep.subr.mxu0 0.0
  %543 = vmatpush1.msra.mxu0 0.0
  %544 = vmatprep.subr.mxu0 0.0
  %545 = vmatpush1.msra.mxu0 0.0
  %546 = vmatprep.subr.mxu0 0.0
  %547 = vmatpush1.msra.mxu0 0.0
  %548 = vmatprep.subr.mxu0 0.0
  %549 = vmatpush1.msra.mxu0 0.0
  %550 = vmatprep.subr.mxu0 0.0
  %551 = vmatpush1.msra.mxu0 0.0
  %552 = vmatprep.subr.mxu0 0.0
  %553 = vmatpush1.msra.mxu0 %v301
  %554 = vmatprep.subr.mxu0 0.0
  %555 = vmatpush1.msra.mxu0 %v300
  %556 = vmatprep.subr.mxu0 0.0
  %557 = vmatpush1.msra.mxu0 %v299
  %558 = vmatprep.subr.mxu0 0.0
  %559 = vmatpush1.msra.mxu0 %v298
  %560 = vmatprep.subr.mxu0 0.0
  %561 = vmatpush2.msra.mxu0 0.0
  %562 = vmatprep.subr.mxu0 0.0
  %563 = vmatpush2.msra.mxu0 0.0
  %564 = vmatprep.subr.mxu0 0.0
  %565 = vmatpush2.msra.mxu0 0.0
  %566 = vmatprep.subr.mxu0 0.0
  %567 = vmatpush2.msra.mxu0 0.0
  %568 = vmatprep.subr.mxu0 0.0
  %569 = vmatpush2.msra.mxu0 0.0
  %570 = vmatprep.subr.mxu0 0.0
  %571 = vmatpush2.msra.mxu0 0.0
  %572 = vmatprep.subr.mxu0 0.0
  %573 = vmatpush2.msra.mxu0 0.0
  %574 = vmatprep.subr.mxu0 0.0
  %575 = vmatpush2.msra.mxu0 0.0
  %576 = vmatprep.subr.mxu0 0.0
  %577 = vmatpush2.msra.mxu0 0.0
  %578 = vmatprep.subr.mxu0 0.0
  %579 = vmatpush2.msra.mxu0 0.0
  %580 = vmatprep.subr.mxu0 0.0
  %581 = vmatpush2.msra.mxu0 0.0
  %582 = vmatprep.subr.mxu0 0.0
  %583 = vmatpush2.msra.mxu0 0.0
  %584 = vmatprep.subr.mxu0 0.0
  %585 = vmatpush2.msra.mxu0 0.0
  %586 = vmatprep.subr.mxu0 0.0
  %587 = vmatpush2.msra.mxu0 0.0
  %588 = vmatprep.subr.mxu0 0.0
  %589 = vmatpush2.msra.mxu0 0.0
  %590 = vmatprep.subr.mxu0 0.0
  %591 = vmatpush2.msra.mxu0 0.0
  %592 = vmatprep.mubr.f32.mxu0 0.0
  %593 = vmatmul.mubr.f32.gmra.mxu0 %v526
  %v594 = vpop.f32.mrf.mxu0
  %v595 = vadd.f32 %v311, %v594
  %v596 = vpop.f32.mrf.mxu0
  %597 = vdwg.mxu0
  %v598 = vadd.f32 %v522, %v595
  %v599 = vxor.u32 %v598, 2147483648
  %v600 = vmul.f32 %v599, 1.442695
  %v601 = vpow.pop %v600
  %v602 = vadd.f32 %v601, 1.0
  %v603 = vrcp.pop %v602
  %v604 = vmul.f32 1.0, %v603
  %606 = vrot.lane.b32.xlu0 %v595, 64
  %v607 = vpop.permute.xlu0 %606
  %v609 = vmul.f32 %v604, %v607
  %611 = vrot.lane.b32.xlu0 %v609, 64
  %v612 = vpop.permute.xlu0 %611
  %v614 = vadd.f32 %v522, %v612
  %v615 = vtanh.pop %v614
  %v616 = vsub.f32 1.0, %v604
  %618 = vrot.lane.b32.xlu0 %v615, 96
  %v619 = vpop.permute.xlu0 %618
  %v621 = vmul.f32 %v616, %v619
  %v622 = vmul.f32 %v604, %v521
  %v623 = vadd.f32 %v621, %v622
  %v624 = vld [vmem:[#allocation2 + $0x18] sm:$0xff]
  %626 = vrot.lane.b32.xlu0 %v623, 96
  %v627 = vpop.permute.xlu0 %626
  %v628 = vsel %vm273, %v627, 0
  %630 = vmatprep.subr.mxu0 0.0
  %631 = vmatpush1.msra.mxu0 0.0
  %632 = vmatprep.subr.mxu0 0.0
  %633 = vmatpush1.msra.mxu0 0.0
  %634 = vmatprep.subr.mxu0 0.0
  %635 = vmatpush1.msra.mxu0 0.0
  %636 = vmatprep.subr.mxu0 0.0
  %637 = vmatpush1.msra.mxu0 0.0
  %638 = vmatprep.subr.mxu0 0.0
  %639 = vmatpush1.msra.mxu0 0.0
  %640 = vmatprep.subr.mxu0 0.0
  %641 = vmatpush1.msra.mxu0 0.0
  %642 = vmatprep.subr.mxu0 0.0
  %643 = vmatpush1.msra.mxu0 0.0
  %644 = vmatprep.subr.mxu0 0.0
  %645 = vmatpush1.msra.mxu0 0.0
  %646 = vmatprep.subr.mxu0 0.0
  %647 = vmatpush1.msra.mxu0 0.0
  %648 = vmatprep.subr.mxu0 0.0
  %649 = vmatpush1.msra.mxu0 0.0
  %650 = vmatprep.subr.mxu0 0.0
  %651 = vmatpush1.msra.mxu0 0.0
  %652 = vmatprep.subr.mxu0 0.0
  %653 = vmatpush1.msra.mxu0 0.0
  %654 = vmatprep.subr.mxu0 0.0
  %655 = vmatpush1.msra.mxu0 %v301
  %656 = vmatprep.subr.mxu0 0.0
  %657 = vmatpush1.msra.mxu0 %v300
  %658 = vmatprep.subr.mxu0 0.0
  %659 = vmatpush1.msra.mxu0 %v299
  %660 = vmatprep.subr.mxu0 0.0
  %661 = vmatpush1.msra.mxu0 %v298
  %662 = vmatprep.subr.mxu0 0.0
  %663 = vmatpush2.msra.mxu0 0.0
  %664 = vmatprep.subr.mxu0 0.0
  %665 = vmatpush2.msra.mxu0 0.0
  %666 = vmatprep.subr.mxu0 0.0
  %667 = vmatpush2.msra.mxu0 0.0
  %668 = vmatprep.subr.mxu0 0.0
  %669 = vmatpush2.msra.mxu0 0.0
  %670 = vmatprep.subr.mxu0 0.0
  %671 = vmatpush2.msra.mxu0 0.0
  %672 = vmatprep.subr.mxu0 0.0
  %673 = vmatpush2.msra.mxu0 0.0
  %674 = vmatprep.subr.mxu0 0.0
  %675 = vmatpush2.msra.mxu0 0.0
  %676 = vmatprep.subr.mxu0 0.0
  %677 = vmatpush2.msra.mxu0 0.0
  %678 = vmatprep.subr.mxu0 0.0
  %679 = vmatpush2.msra.mxu0 0.0
  %680 = vmatprep.subr.mxu0 0.0
  %681 = vmatpush2.msra.mxu0 0.0
  %682 = vmatprep.subr.mxu0 0.0
  %683 = vmatpush2.msra.mxu0 0.0
  %684 = vmatprep.subr.mxu0 0.0
  %685 = vmatpush2.msra.mxu0 0.0
  %686 = vmatprep.subr.mxu0 0.0
  %687 = vmatpush2.msra.mxu0 0.0
  %688 = vmatprep.subr.mxu0 0.0
  %689 = vmatpush2.msra.mxu0 0.0
  %690 = vmatprep.subr.mxu0 0.0
  %691 = vmatpush2.msra.mxu0 0.0
  %692 = vmatprep.subr.mxu0 0.0
  %693 = vmatpush2.msra.mxu0 0.0
  %694 = vmatprep.mubr.f32.mxu0 0.0
  %695 = vmatmul.mubr.f32.gmra.mxu0 %v628
  %v696 = vpop.f32.mrf.mxu0
  %v697 = vadd.f32 %v311, %v696
  %v698 = vpop.f32.mrf.mxu0
  %699 = vdwg.mxu0
  %v700 = vadd.f32 %v624, %v697
  %v701 = vxor.u32 %v700, 2147483648
  %v702 = vmul.f32 %v701, 1.442695
  %v703 = vpow.pop %v702
  %v704 = vadd.f32 %v703, 1.0
  %v705 = vrcp.pop %v704
  %v706 = vmul.f32 1.0, %v705
  %708 = vrot.lane.b32.xlu0 %v697, 64
  %v709 = vpop.permute.xlu0 %708
  %v711 = vmul.f32 %v706, %v709
  %713 = vrot.lane.b32.xlu0 %v711, 64
  %v714 = vpop.permute.xlu0 %713
  %v716 = vadd.f32 %v624, %v714
  %v717 = vtanh.pop %v716
  %v718 = vsub.f32 1.0, %v706
  %720 = vrot.lane.b32.xlu0 %v717, 96
  %v721 = vpop.permute.xlu0 %720
  %v723 = vmul.f32 %v718, %v721
  %v724 = vmul.f32 %v706, %v623
  %v725 = vadd.f32 %v723, %v724
  %v726 = vld [vmem:[#allocation2 + $0x20] sm:$0xff]
  %728 = vrot.lane.b32.xlu0 %v725, 96
  %v729 = vpop.permute.xlu0 %728
  %v730 = vsel %vm273, %v729, 0
  %732 = vmatprep.subr.mxu0 0.0
  %733 = vmatpush1.msra.mxu0 0.0
  %734 = vmatprep.subr.mxu0 0.0
  %735 = vmatpush1.msra.mxu0 0.0
  %736 = vmatprep.subr.mxu0 0.0
  %737 = vmatpush1.msra.mxu0 0.0
  %738 = vmatprep.subr.mxu0 0.0
  %739 = vmatpush1.msra.mxu0 0.0
  %740 = vmatprep.subr.mxu0 0.0
  %741 = vmatpush1.msra.mxu0 0.0
  %742 = vmatprep.subr.mxu0 0.0
  %743 = vmatpush1.msra.mxu0 0.0
  %744 = vmatprep.subr.mxu0 0.0
  %745 = vmatpush1.msra.mxu0 0.0
  %746 = vmatprep.subr.mxu0 0.0
  %747 = vmatpush1.msra.mxu0 0.0
  %748 = vmatprep.subr.mxu0 0.0
  %749 = vmatpush1.msra.mxu0 0.0
  %750 = vmatprep.subr.mxu0 0.0
  %751 = vmatpush1.msra.mxu0 0.0
  %752 = vmatprep.subr.mxu0 0.0
  %753 = vmatpush1.msra.mxu0 0.0
  %754 = vmatprep.subr.mxu0 0.0
  %755 = vmatpush1.msra.mxu0 0.0
  %756 = vmatprep.subr.mxu0 0.0
  %757 = vmatpush1.msra.mxu0 %v301
  %758 = vmatprep.subr.mxu0 0.0
  %759 = vmatpush1.msra.mxu0 %v300
  %760 = vmatprep.subr.mxu0 0.0
  %761 = vmatpush1.msra.mxu0 %v299
  %762 = vmatprep.subr.mxu0 0.0
  %763 = vmatpush1.msra.mxu0 %v298
  %764 = vmatprep.subr.mxu0 0.0
  %765 = vmatpush2.msra.mxu0 0.0
  %766 = vmatprep.subr.mxu0 0.0
  %767 = vmatpush2.msra.mxu0 0.0
  %768 = vmatprep.subr.mxu0 0.0
  %769 = vmatpush2.msra.mxu0 0.0
  %770 = vmatprep.subr.mxu0 0.0
  %771 = vmatpush2.msra.mxu0 0.0
  %772 = vmatprep.subr.mxu0 0.0
  %773 = vmatpush2.msra.mxu0 0.0
  %774 = vmatprep.subr.mxu0 0.0
  %775 = vmatpush2.msra.mxu0 0.0
  %776 = vmatprep.subr.mxu0 0.0
  %777 = vmatpush2.msra.mxu0 0.0
  %778 = vmatprep.subr.mxu0 0.0
  %779 = vmatpush2.msra.mxu0 0.0
  %780 = vmatprep.subr.mxu0 0.0
  %781 = vmatpush2.msra.mxu0 0.0
  %782 = vmatprep.subr.mxu0 0.0
  %783 = vmatpush2.msra.mxu0 0.0
  %784 = vmatprep.subr.mxu0 0.0
  %785 = vmatpush2.msra.mxu0 0.0
  %786 = vmatprep.subr.mxu0 0.0
  %787 = vmatpush2.msra.mxu0 0.0
  %788 = vmatprep.subr.mxu0 0.0
  %789 = vmatpush2.msra.mxu0 0.0
  %790 = vmatprep.subr.mxu0 0.0
  %791 = vmatpush2.msra.mxu0 0.0
  %792 = vmatprep.subr.mxu0 0.0
  %793 = vmatpush2.msra.mxu0 0.0
  %794 = vmatprep.subr.mxu0 0.0
  %795 = vmatpush2.msra.mxu0 0.0
  %796 = vmatprep.mubr.f32.mxu0 0.0
  %797 = vmatmul.mubr.f32.gmra.mxu0 %v730
  %v798 = vpop.f32.mrf.mxu0
  %v799 = vadd.f32 %v311, %v798
  %v800 = vpop.f32.mrf.mxu0
  %801 = vdwg.mxu0
  %v802 = vadd.f32 %v726, %v799
  %v803 = vxor.u32 %v802, 2147483648
  %v804 = vmul.f32 %v803, 1.442695
  %v805 = vpow.pop %v804
  %v806 = vadd.f32 %v805, 1.0
  %v807 = vrcp.pop %v806
  %v808 = vmul.f32 1.0, %v807
  %810 = vrot.lane.b32.xlu0 %v799, 64
  %v811 = vpop.permute.xlu0 %810
  %v813 = vmul.f32 %v808, %v811
  %815 = vrot.lane.b32.xlu0 %v813, 64
  %v816 = vpop.permute.xlu0 %815
  %v818 = vadd.f32 %v726, %v816
  %v819 = vtanh.pop %v818
  %v820 = vsub.f32 1.0, %v808
  %822 = vrot.lane.b32.xlu0 %v819, 96
  %v823 = vpop.permute.xlu0 %822
  %v825 = vmul.f32 %v820, %v823
  %v826 = vmul.f32 %v808, %v725
  %v827 = vadd.f32 %v825, %v826
  %v828 = vld [vmem:[#allocation2 + $0x28] sm:$0xff]
  %830 = vrot.lane.b32.xlu0 %v827, 96
  %v831 = vpop.permute.xlu0 %830
  %v832 = vsel %vm273, %v831, 0
  %834 = vmatprep.subr.mxu0 0.0
  %835 = vmatpush1.msra.mxu0 0.0
  %836 = vmatprep.subr.mxu0 0.0
  %837 = vmatpush1.msra.mxu0 0.0
  %838 = vmatprep.subr.mxu0 0.0
  %839 = vmatpush1.msra.mxu0 0.0
  %840 = vmatprep.subr.mxu0 0.0
  %841 = vmatpush1.msra.mxu0 0.0
  %842 = vmatprep.subr.mxu0 0.0
  %843 = vmatpush1.msra.mxu0 0.0
  %844 = vmatprep.subr.mxu0 0.0
  %845 = vmatpush1.msra.mxu0 0.0
  %846 = vmatprep.subr.mxu0 0.0
  %847 = vmatpush1.msra.mxu0 0.0
  %848 = vmatprep.subr.mxu0 0.0
  %849 = vmatpush1.msra.mxu0 0.0
  %850 = vmatprep.subr.mxu0 0.0
  %851 = vmatpush1.msra.mxu0 0.0
  %852 = vmatprep.subr.mxu0 0.0
  %853 = vmatpush1.msra.mxu0 0.0
  %854 = vmatprep.subr.mxu0 0.0
  %855 = vmatpush1.msra.mxu0 0.0
  %856 = vmatprep.subr.mxu0 0.0
  %857 = vmatpush1.msra.mxu0 0.0
  %858 = vmatprep.subr.mxu0 0.0
  %859 = vmatpush1.msra.mxu0 %v301
  %860 = vmatprep.subr.mxu0 0.0
  %861 = vmatpush1.msra.mxu0 %v300
  %862 = vmatprep.subr.mxu0 0.0
  %863 = vmatpush1.msra.mxu0 %v299
  %864 = vmatprep.subr.mxu0 0.0
  %865 = vmatpush1.msra.mxu0 %v298
  %866 = vmatprep.subr.mxu0 0.0
  %867 = vmatpush2.msra.mxu0 0.0
  %868 = vmatprep.subr.mxu0 0.0
  %869 = vmatpush2.msra.mxu0 0.0
  %870 = vmatprep.subr.mxu0 0.0
  %871 = vmatpush2.msra.mxu0 0.0
  %872 = vmatprep.subr.mxu0 0.0
  %873 = vmatpush2.msra.mxu0 0.0
  %874 = vmatprep.subr.mxu0 0.0
  %875 = vmatpush2.msra.mxu0 0.0
  %876 = vmatprep.subr.mxu0 0.0
  %877 = vmatpush2.msra.mxu0 0.0
  %878 = vmatprep.subr.mxu0 0.0
  %879 = vmatpush2.msra.mxu0 0.0
  %880 = vmatprep.subr.mxu0 0.0
  %881 = vmatpush2.msra.mxu0 0.0
  %882 = vmatprep.subr.mxu0 0.0
  %883 = vmatpush2.msra.mxu0 0.0
  %884 = vmatprep.subr.mxu0 0.0
  %885 = vmatpush2.msra.mxu0 0.0
  %886 = vmatprep.subr.mxu0 0.0
  %887 = vmatpush2.msra.mxu0 0.0
  %888 = vmatprep.subr.mxu0 0.0
  %889 = vmatpush2.msra.mxu0 0.0
  %890 = vmatprep.subr.mxu0 0.0
  %891 = vmatpush2.msra.mxu0 0.0
  %892 = vmatprep.subr.mxu0 0.0
  %893 = vmatpush2.msra.mxu0 0.0
  %894 = vmatprep.subr.mxu0 0.0
  %895 = vmatpush2.msra.mxu0 0.0
  %896 = vmatprep.subr.mxu0 0.0
  %897 = vmatpush2.msra.mxu0 0.0
  %898 = vmatprep.mubr.f32.mxu0 0.0
  %899 = vmatmul.mubr.f32.gmra.mxu0 %v832
  %v900 = vpop.f32.mrf.mxu0
  %v901 = vadd.f32 %v311, %v900
  %v902 = vpop.f32.mrf.mxu0
  %903 = vdwg.mxu0
  %v904 = vadd.f32 %v828, %v901
  %v905 = vxor.u32 %v904, 2147483648
  %v906 = vmul.f32 %v905, 1.442695
  %v907 = vpow.pop %v906
  %v908 = vadd.f32 %v907, 1.0
  %v909 = vrcp.pop %v908
  %v910 = vmul.f32 1.0, %v909
  %912 = vrot.lane.b32.xlu0 %v901, 64
  %v913 = vpop.permute.xlu0 %912
  %v915 = vmul.f32 %v910, %v913
  %917 = vrot.lane.b32.xlu0 %v915, 64
  %v918 = vpop.permute.xlu0 %917
  %v920 = vadd.f32 %v828, %v918
  %v921 = vtanh.pop %v920
  %v922 = vsub.f32 1.0, %v910
  %924 = vrot.lane.b32.xlu0 %v921, 96
  %v925 = vpop.permute.xlu0 %924
  %v927 = vmul.f32 %v922, %v925
  %v928 = vmul.f32 %v910, %v827
  %v929 = vadd.f32 %v927, %v928
  %v930 = vld [vmem:[#allocation2 + $0x30] sm:$0xff]
  %932 = vrot.lane.b32.xlu0 %v929, 96
  %v933 = vpop.permute.xlu0 %932
  %v934 = vsel %vm273, %v933, 0
  %936 = vmatprep.subr.mxu0 0.0
  %937 = vmatpush1.msra.mxu0 0.0
  %938 = vmatprep.subr.mxu0 0.0
  %939 = vmatpush1.msra.mxu0 0.0
  %940 = vmatprep.subr.mxu0 0.0
  %941 = vmatpush1.msra.mxu0 0.0
  %942 = vmatprep.subr.mxu0 0.0
  %943 = vmatpush1.msra.mxu0 0.0
  %944 = vmatprep.subr.mxu0 0.0
  %945 = vmatpush1.msra.mxu0 0.0
  %946 = vmatprep.subr.mxu0 0.0
  %947 = vmatpush1.msra.mxu0 0.0
  %948 = vmatprep.subr.mxu0 0.0
  %949 = vmatpush1.msra.mxu0 0.0
  %950 = vmatprep.subr.mxu0 0.0
  %951 = vmatpush1.msra.mxu0 0.0
  %952 = vmatprep.subr.mxu0 0.0
  %953 = vmatpush1.msra.mxu0 0.0
  %954 = vmatprep.subr.mxu0 0.0
  %955 = vmatpush1.msra.mxu0 0.0
  %956 = vmatprep.subr.mxu0 0.0
  %957 = vmatpush1.msra.mxu0 0.0
  %958 = vmatprep.subr.mxu0 0.0
  %959 = vmatpush1.msra.mxu0 0.0
  %960 = vmatprep.subr.mxu0 0.0
  %961 = vmatpush1.msra.mxu0 %v301
  %962 = vmatprep.subr.mxu0 0.0
  %963 = vmatpush1.msra.mxu0 %v300
  %964 = vmatprep.subr.mxu0 0.0
  %965 = vmatpush1.msra.mxu0 %v299
  %966 = vmatprep.subr.mxu0 0.0
  %967 = vmatpush1.msra.mxu0 %v298
  %968 = vmatprep.subr.mxu0 0.0
  %969 = vmatpush2.msra.mxu0 0.0
  %970 = vmatprep.subr.mxu0 0.0
  %971 = vmatpush2.msra.mxu0 0.0
  %972 = vmatprep.subr.mxu0 0.0
  %973 = vmatpush2.msra.mxu0 0.0
  %974 = vmatprep.subr.mxu0 0.0
  %975 = vmatpush2.msra.mxu0 0.0
  %976 = vmatprep.subr.mxu0 0.0
  %977 = vmatpush2.msra.mxu0 0.0
  %978 = vmatprep.subr.mxu0 0.0
  %979 = vmatpush2.msra.mxu0 0.0
  %980 = vmatprep.subr.mxu0 0.0
  %981 = vmatpush2.msra.mxu0 0.0
  %982 = vmatprep.subr.mxu0 0.0
  %983 = vmatpush2.msra.mxu0 0.0
  %984 = vmatprep.subr.mxu0 0.0
  %985 = vmatpush2.msra.mxu0 0.0
  %986 = vmatprep.subr.mxu0 0.0
  %987 = vmatpush2.msra.mxu0 0.0
  %988 = vmatprep.subr.mxu0 0.0
  %989 = vmatpush2.msra.mxu0 0.0
  %990 = vmatprep.subr.mxu0 0.0
  %991 = vmatpush2.msra.mxu0 0.0
  %992 = vmatprep.subr.mxu0 0.0
  %993 = vmatpush2.msra.mxu0 0.0
  %994 = vmatprep.subr.mxu0 0.0
  %995 = vmatpush2.msra.mxu0 0.0
  %996 = vmatprep.subr.mxu0 0.0
  %997 = vmatpush2.msra.mxu0 0.0
  %998 = vmatprep.subr.mxu0 0.0
  %999 = vmatpush2.msra.mxu0 0.0
  %1000 = vmatprep.mubr.f32.mxu0 0.0
  %1001 = vmatmul.mubr.f32.gmra.mxu0 %v934
  %v1002 = vpop.f32.mrf.mxu0
  %v1003 = vadd.f32 %v311, %v1002
  %v1004 = vpop.f32.mrf.mxu0
  %1005 = vdwg.mxu0
  %v1006 = vadd.f32 %v930, %v1003
  %v1007 = vxor.u32 %v1006, 2147483648
  %v1008 = vmul.f32 %v1007, 1.442695
  %v1009 = vpow.pop %v1008
  %v1010 = vadd.f32 %v1009, 1.0
  %v1011 = vrcp.pop %v1010
  %v1012 = vmul.f32 1.0, %v1011
  %1014 = vrot.lane.b32.xlu0 %v1003, 64
  %v1015 = vpop.permute.xlu0 %1014
  %v1017 = vmul.f32 %v1012, %v1015
  %1019 = vrot.lane.b32.xlu0 %v1017, 64
  %v1020 = vpop.permute.xlu0 %1019
  %v1022 = vadd.f32 %v930, %v1020
  %v1023 = vtanh.pop %v1022
  %v1024 = vsub.f32 1.0, %v1012
  %1026 = vrot.lane.b32.xlu0 %v1023, 96
  %v1027 = vpop.permute.xlu0 %1026
  %v1029 = vmul.f32 %v1024, %v1027
  %v1030 = vmul.f32 %v1012, %v929
  %v1031 = vadd.f32 %v1029, %v1030
  %v1032 = vld [vmem:[#allocation2 + $0x38] sm:$0xff]
  %1034 = vrot.lane.b32.xlu0 %v1031, 96
  %v1035 = vpop.permute.xlu0 %1034
  %v1036 = vsel %vm273, %v1035, 0
  %1038 = vmatprep.subr.mxu0 0.0
  %1039 = vmatpush1.msra.mxu0 0.0
  %1040 = vmatprep.subr.mxu0 0.0
  %1041 = vmatpush1.msra.mxu0 0.0
  %1042 = vmatprep.subr.mxu0 0.0
  %1043 = vmatpush1.msra.mxu0 0.0
  %1044 = vmatprep.subr.mxu0 0.0
  %1045 = vmatpush1.msra.mxu0 0.0
  %1046 = vmatprep.subr.mxu0 0.0
  %1047 = vmatpush1.msra.mxu0 0.0
  %1048 = vmatprep.subr.mxu0 0.0
  %1049 = vmatpush1.msra.mxu0 0.0
  %1050 = vmatprep.subr.mxu0 0.0
  %1051 = vmatpush1.msra.mxu0 0.0
  %1052 = vmatprep.subr.mxu0 0.0
  %1053 = vmatpush1.msra.mxu0 0.0
  %1054 = vmatprep.subr.mxu0 0.0
  %1055 = vmatpush1.msra.mxu0 0.0
  %1056 = vmatprep.subr.mxu0 0.0
  %1057 = vmatpush1.msra.mxu0 0.0
  %1058 = vmatprep.subr.mxu0 0.0
  %1059 = vmatpush1.msra.mxu0 0.0
  %1060 = vmatprep.subr.mxu0 0.0
  %1061 = vmatpush1.msra.mxu0 0.0
  %1062 = vmatprep.subr.mxu0 0.0
  %1063 = vmatpush1.msra.mxu0 %v301
  %1064 = vmatprep.subr.mxu0 0.0
  %1065 = vmatpush1.msra.mxu0 %v300
  %1066 = vmatprep.subr.mxu0 0.0
  %1067 = vmatpush1.msra.mxu0 %v299
  %1068 = vmatprep.subr.mxu0 0.0
  %1069 = vmatpush1.msra.mxu0 %v298
  %1070 = vmatprep.subr.mxu0 0.0
  %1071 = vmatpush2.msra.mxu0 0.0
  %1072 = vmatprep.subr.mxu0 0.0
  %1073 = vmatpush2.msra.mxu0 0.0
  %1074 = vmatprep.subr.mxu0 0.0
  %1075 = vmatpush2.msra.mxu0 0.0
  %1076 = vmatprep.subr.mxu0 0.0
  %1077 = vmatpush2.msra.mxu0 0.0
  %1078 = vmatprep.subr.mxu0 0.0
  %1079 = vmatpush2.msra.mxu0 0.0
  %1080 = vmatprep.subr.mxu0 0.0
  %1081 = vmatpush2.msra.mxu0 0.0
  %1082 = vmatprep.subr.mxu0 0.0
  %1083 = vmatpush2.msra.mxu0 0.0
  %1084 = vmatprep.subr.mxu0 0.0
  %1085 = vmatpush2.msra.mxu0 0.0
  %1086 = vmatprep.subr.mxu0 0.0
  %1087 = vmatpush2.msra.mxu0 0.0
  %1088 = vmatprep.subr.mxu0 0.0
  %1089 = vmatpush2.msra.mxu0 0.0
  %1090 = vmatprep.subr.mxu0 0.0
  %1091 = vmatpush2.msra.mxu0 0.0
  %1092 = vmatprep.subr.mxu0 0.0
  %1093 = vmatpush2.msra.mxu0 0.0
  %1094 = vmatprep.subr.mxu0 0.0
  %1095 = vmatpush2.msra.mxu0 0.0
  %1096 = vmatprep.subr.mxu0 0.0
  %1097 = vmatpush2.msra.mxu0 0.0
  %1098 = vmatprep.subr.mxu0 0.0
  %1099 = vmatpush2.msra.mxu0 0.0
  %1100 = vmatprep.subr.mxu0 0.0
  %1101 = vmatpush2.msra.mxu0 0.0
  %1102 = vmatprep.mubr.f32.mxu0 0.0
  %1103 = vmatmul.mubr.f32.gmra.mxu0 %v1036
  %v1104 = vpop.f32.mrf.mxu0
  %v1105 = vadd.f32 %v311, %v1104
  %v1106 = vpop.f32.mrf.mxu0
  %1107 = vdwg.mxu0
  %v1108 = vadd.f32 %v1032, %v1105
  %v1109 = vxor.u32 %v1108, 2147483648
  %v1110 = vmul.f32 %v1109, 1.442695
  %v1111 = vpow.pop %v1110
  %v1112 = vadd.f32 %v1111, 1.0
  %v1113 = vrcp.pop %v1112
  %v1114 = vmul.f32 1.0, %v1113
  %1116 = vrot.lane.b32.xlu0 %v1105, 64
  %v1117 = vpop.permute.xlu0 %1116
  %v1119 = vmul.f32 %v1114, %v1117
  %1121 = vrot.lane.b32.xlu0 %v1119, 64
  %v1122 = vpop.permute.xlu0 %1121
  %v1124 = vadd.f32 %v1032, %v1122
  %v1125 = vtanh.pop %v1124
  %v1126 = vsub.f32 1.0, %v1114
  %1128 = vrot.lane.b32.xlu0 %v1125, 96
  %v1129 = vpop.permute.xlu0 %1128
  %v1131 = vmul.f32 %v1126, %v1129
  %v1132 = vmul.f32 %v1114, %v1031
  %v1133 = vadd.f32 %v1131, %v1132
  %v1134 = vld [vmem:[%s8] sm:$0xff]
  %v1135 = vld [vmem:[%s8 + $0x8] sm:$0xff]
  %v1136 = vld [vmem:[%s8 + $0x10] sm:$0xff]
  %v1137 = vld [vmem:[%s8 + $0x18] sm:$0xff]
  %v1138 = vld [vmem:[%s9] sm:$0x1]
  %v1140 = vlaneseq
  %v1141 = vshrl.u32 %v1140, 7
  %v1142 = vsub.s32 0, %v1141
  %v1143 = vrot.slane %v1138, %v1142
  %1146 = vrot.lane.b32.xlu0 %v1133, 96
  %v1147 = vpop.permute.xlu0 %1146
  %v1148 = vsel %vm273, %v1147, 0
  %1150 = vmatprep.subr.mxu0 0.0
  %1151 = vmatpush1.msra.mxu0 0.0
  %1152 = vmatprep.subr.mxu0 0.0
  %1153 = vmatpush1.msra.mxu0 0.0
  %1154 = vmatprep.subr.mxu0 0.0
  %1155 = vmatpush1.msra.mxu0 0.0
  %1156 = vmatprep.subr.mxu0 0.0
  %1157 = vmatpush1.msra.mxu0 0.0
  %1158 = vmatprep.subr.mxu0 0.0
  %1159 = vmatpush1.msra.mxu0 0.0
  %1160 = vmatprep.subr.mxu0 0.0
  %1161 = vmatpush1.msra.mxu0 0.0
  %1162 = vmatprep.subr.mxu0 0.0
  %1163 = vmatpush1.msra.mxu0 0.0
  %1164 = vmatprep.subr.mxu0 0.0
  %1165 = vmatpush1.msra.mxu0 0.0
  %1166 = vmatprep.subr.mxu0 0.0
  %1167 = vmatpush1.msra.mxu0 0.0
  %1168 = vmatprep.subr.mxu0 0.0
  %1169 = vmatpush1.msra.mxu0 0.0
  %1170 = vmatprep.subr.mxu0 0.0
  %1171 = vmatpush1.msra.mxu0 0.0
  %1172 = vmatprep.subr.mxu0 0.0
  %1173 = vmatpush1.msra.mxu0 0.0
  %1174 = vmatprep.subr.mxu0 0.0
  %1175 = vmatpush1.msra.mxu0 %v1137
  %1176 = vmatprep.subr.mxu0 0.0
  %1177 = vmatpush1.msra.mxu0 %v1136
  %1178 = vmatprep.subr.mxu0 0.0
  %1179 = vmatpush1.msra.mxu0 %v1135
  %1180 = vmatprep.subr.mxu0 0.0
  %1181 = vmatpush1.msra.mxu0 %v1134
  %1182 = vmatprep.subr.mxu0 0.0
  %1183 = vmatpush2.msra.mxu0 0.0
  %1184 = vmatprep.subr.mxu0 0.0
  %1185 = vmatpush2.msra.mxu0 0.0
  %1186 = vmatprep.subr.mxu0 0.0
  %1187 = vmatpush2.msra.mxu0 0.0
  %1188 = vmatprep.subr.mxu0 0.0
  %1189 = vmatpush2.msra.mxu0 0.0
  %1190 = vmatprep.subr.mxu0 0.0
  %1191 = vmatpush2.msra.mxu0 0.0
  %1192 = vmatprep.subr.mxu0 0.0
  %1193 = vmatpush2.msra.mxu0 0.0
  %1194 = vmatprep.subr.mxu0 0.0
  %1195 = vmatpush2.msra.mxu0 0.0
  %1196 = vmatprep.subr.mxu0 0.0
  %1197 = vmatpush2.msra.mxu0 0.0
  %1198 = vmatprep.subr.mxu0 0.0
  %1199 = vmatpush2.msra.mxu0 0.0
  %1200 = vmatprep.subr.mxu0 0.0
  %1201 = vmatpush2.msra.mxu0 0.0
  %1202 = vmatprep.subr.mxu0 0.0
  %1203 = vmatpush2.msra.mxu0 0.0
  %1204 = vmatprep.subr.mxu0 0.0
  %1205 = vmatpush2.msra.mxu0 0.0
  %1206 = vmatprep.subr.mxu0 0.0
  %1207 = vmatpush2.msra.mxu0 0.0
  %1208 = vmatprep.subr.mxu0 0.0
  %1209 = vmatpush2.msra.mxu0 0.0
  %1210 = vmatprep.subr.mxu0 0.0
  %1211 = vmatpush2.msra.mxu0 0.0
  %1212 = vmatprep.subr.mxu0 0.0
  %1213 = vmatpush2.msra.mxu0 0.0
  %1214 = vmatprep.mubr.f32.mxu0 0.0
  %1215 = vmatmul.mubr.f32.gmra.mxu0 %v1148
  %v1216 = vpop.f32.mrf.mxu0
  %v1217 = vadd.f32 %v1143, %v1216
  %v1218 = vpop.f32.mrf.mxu0
  %1219 = vdwg.mxu0
  %vm1220 = vcmask 64512
  %1221 = vst.msk [vmem:[%s15] sm:$0xff] %vm1220, %v1217
  %1223 = vrot.lane.b32.xlu0 %v1217, 120
  %v1224 = vpop.permute.xlu0 %1223
  %1226 = vst.msk [vmem:[%s16] sm:$0xff] %vm1220, %v1224
  %v1227 = vmul.f32 %v1217, 1.442695
  %v1228 = vpow.pop %v1227
  %v1229 = vmul.f32 %v1228, 0.5
  %v1230 = vld [vmem:[%s1] sm:$0xff]
  %1232 = vrot.lane.b32.xlu0 %v1230, 8
  %v1233 = vpop.permute.xlu0 %1232
  %v1235 = vmul.f32 %v1229, %v1233
  %1237 = vrot.lane.b32.xlu0 %v1235, 120
  %v1238 = vpop.permute.xlu0 %1237
  %v1240 = vadd.f32 %v1217, %v1238
  %v1241 = vld [vmem:[%s10] sm:$0xff]
  %v1242 = vld [vmem:[%s11] sm:$0x1]
  %v1244 = vlaneseq
  %v1245 = vshrl.u32 %v1244, 7
  %v1246 = vsub.s32 0, %v1245
  %v1247 = vrot.slane %v1242, %v1246
  %v1250 = vsel %vm1220, %v1240, 0
  %1252 = vmatprep.subr.mxu0 0.0
  %1253 = vmatpush1.msra.mxu0 0.0
  %1254 = vmatprep.subr.mxu0 0.0
  %1255 = vmatpush1.msra.mxu0 0.0
  %1256 = vmatprep.subr.mxu0 0.0
  %1257 = vmatpush1.msra.mxu0 0.0
  %1258 = vmatprep.subr.mxu0 0.0
  %1259 = vmatpush1.msra.mxu0 0.0
  %1260 = vmatprep.subr.mxu0 0.0
  %1261 = vmatpush1.msra.mxu0 0.0
  %1262 = vmatprep.subr.mxu0 0.0
  %1263 = vmatpush1.msra.mxu0 0.0
  %1264 = vmatprep.subr.mxu0 0.0
  %1265 = vmatpush1.msra.mxu0 0.0
  %1266 = vmatprep.subr.mxu0 0.0
  %1267 = vmatpush1.msra.mxu0 0.0
  %1268 = vmatprep.subr.mxu0 0.0
  %1269 = vmatpush1.msra.mxu0 0.0
  %1270 = vmatprep.subr.mxu0 0.0
  %1271 = vmatpush1.msra.mxu0 0.0
  %1272 = vmatprep.subr.mxu0 0.0
  %1273 = vmatpush1.msra.mxu0 0.0
  %1274 = vmatprep.subr.mxu0 0.0
  %1275 = vmatpush1.msra.mxu0 0.0
  %1276 = vmatprep.subr.mxu0 0.0
  %1277 = vmatpush1.msra.mxu0 0.0
  %1278 = vmatprep.subr.mxu0 0.0
  %1279 = vmatpush1.msra.mxu0 0.0
  %1280 = vmatprep.subr.mxu0 0.0
  %1281 = vmatpush1.msra.mxu0 0.0
  %1282 = vmatprep.subr.mxu0 0.0
  %1283 = vmatpush1.msra.mxu0 %v1241
  %1284 = vmatprep.subr.mxu0 0.0
  %1285 = vmatpush2.msra.mxu0 0.0
  %1286 = vmatprep.subr.mxu0 0.0
  %1287 = vmatpush2.msra.mxu0 0.0
  %1288 = vmatprep.subr.mxu0 0.0
  %1289 = vmatpush2.msra.mxu0 0.0
  %1290 = vmatprep.subr.mxu0 0.0
  %1291 = vmatpush2.msra.mxu0 0.0
  %1292 = vmatprep.subr.mxu0 0.0
  %1293 = vmatpush2.msra.mxu0 0.0
  %1294 = vmatprep.subr.mxu0 0.0
  %1295 = vmatpush2.msra.mxu0 0.0
  %1296 = vmatprep.subr.mxu0 0.0
  %1297 = vmatpush2.msra.mxu0 0.0
  %1298 = vmatprep.subr.mxu0 0.0
  %1299 = vmatpush2.msra.mxu0 0.0
  %1300 = vmatprep.subr.mxu0 0.0
  %1301 = vmatpush2.msra.mxu0 0.0
  %1302 = vmatprep.subr.mxu0 0.0
  %1303 = vmatpush2.msra.mxu0 0.0
  %1304 = vmatprep.subr.mxu0 0.0
  %1305 = vmatpush2.msra.mxu0 0.0
  %1306 = vmatprep.subr.mxu0 0.0
  %1307 = vmatpush2.msra.mxu0 0.0
  %1308 = vmatprep.subr.mxu0 0.0
  %1309 = vmatpush2.msra.mxu0 0.0
  %1310 = vmatprep.subr.mxu0 0.0
  %1311 = vmatpush2.msra.mxu0 0.0
  %1312 = vmatprep.subr.mxu0 0.0
  %1313 = vmatpush2.msra.mxu0 0.0
  %1314 = vmatprep.subr.mxu0 0.0
  %1315 = vmatpush2.msra.mxu0 0.0
  %1316 = vmatprep.mubr.f32.mxu0 0.0
  %1317 = vmatmul.mubr.f32.gmra.mxu0 %v1250
  %v1318 = vpop.f32.mrf.mxu0
  %v1319 = vadd.f32 %v1247, %v1318
  %v1320 = vpop.f32.mrf.mxu0
  %1321 = vdwg.mxu0
  %v1322 = vtanh.pop %v1319
  %v1323 = vld [vmem:[#allocation3] sm:$0xff]
  %v1325 = vsel %vm273, %v1322, 0
  %1327 = vmatprep.subr.mxu0 0.0
  %1328 = vmatpush1.msra.mxu0 0.0
  %1329 = vmatprep.subr.mxu0 0.0
  %1330 = vmatpush1.msra.mxu0 0.0
  %1331 = vmatprep.subr.mxu0 0.0
  %1332 = vmatpush1.msra.mxu0 0.0
  %1333 = vmatprep.subr.mxu0 0.0
  %1334 = vmatpush1.msra.mxu0 0.0
  %1335 = vmatprep.subr.mxu0 0.0
  %1336 = vmatpush1.msra.mxu0 0.0
  %1337 = vmatprep.subr.mxu0 0.0
  %1338 = vmatpush1.msra.mxu0 0.0
  %1339 = vmatprep.subr.mxu0 0.0
  %1340 = vmatpush1.msra.mxu0 0.0
  %1341 = vmatprep.subr.mxu0 0.0
  %1342 = vmatpush1.msra.mxu0 0.0
  %1343 = vmatprep.subr.mxu0 0.0
  %1344 = vmatpush1.msra.mxu0 0.0
  %1345 = vmatprep.subr.mxu0 0.0
  %1346 = vmatpush1.msra.mxu0 0.0
  %1347 = vmatprep.subr.mxu0 0.0
  %1348 = vmatpush1.msra.mxu0 0.0
  %1349 = vmatprep.subr.mxu0 0.0
  %1350 = vmatpush1.msra.mxu0 0.0
  %1351 = vmatprep.subr.mxu0 0.0
  %1352 = vmatpush1.msra.mxu0 %v305
  %1353 = vmatprep.subr.mxu0 0.0
  %1354 = vmatpush1.msra.mxu0 %v304
  %1355 = vmatprep.subr.mxu0 0.0
  %1356 = vmatpush1.msra.mxu0 %v303
  %1357 = vmatprep.subr.mxu0 0.0
  %1358 = vmatpush1.msra.mxu0 %v302
  %1359 = vmatprep.subr.mxu0 0.0
  %1360 = vmatpush2.msra.mxu0 0.0
  %1361 = vmatprep.subr.mxu0 0.0
  %1362 = vmatpush2.msra.mxu0 0.0
  %1363 = vmatprep.subr.mxu0 0.0
  %1364 = vmatpush2.msra.mxu0 0.0
  %1365 = vmatprep.subr.mxu0 0.0
  %1366 = vmatpush2.msra.mxu0 0.0
  %1367 = vmatprep.subr.mxu0 0.0
  %1368 = vmatpush2.msra.mxu0 0.0
  %1369 = vmatprep.subr.mxu0 0.0
  %1370 = vmatpush2.msra.mxu0 0.0
  %1371 = vmatprep.subr.mxu0 0.0
  %1372 = vmatpush2.msra.mxu0 0.0
  %1373 = vmatprep.subr.mxu0 0.0
  %1374 = vmatpush2.msra.mxu0 0.0
  %1375 = vmatprep.subr.mxu0 0.0
  %1376 = vmatpush2.msra.mxu0 0.0
  %1377 = vmatprep.subr.mxu0 0.0
  %1378 = vmatpush2.msra.mxu0 0.0
  %1379 = vmatprep.subr.mxu0 0.0
  %1380 = vmatpush2.msra.mxu0 0.0
  %1381 = vmatprep.subr.mxu0 0.0
  %1382 = vmatpush2.msra.mxu0 0.0
  %1383 = vmatprep.subr.mxu0 0.0
  %1384 = vmatpush2.msra.mxu0 0.0
  %1385 = vmatprep.subr.mxu0 0.0
  %1386 = vmatpush2.msra.mxu0 0.0
  %1387 = vmatprep.subr.mxu0 0.0
  %1388 = vmatpush2.msra.mxu0 0.0
  %1389 = vmatprep.subr.mxu0 0.0
  %1390 = vmatpush2.msra.mxu0 0.0
  %1391 = vmatprep.mubr.f32.mxu0 0.0
  %1392 = vmatmul.mubr.f32.gmra.mxu0 %v1325
  %v1393 = vpop.f32.mrf.mxu0
  %v1394 = vadd.f32 %v318, %v1393
  %v1395 = vpop.f32.mrf.mxu0
  %1396 = vdwg.mxu0
  %v1397 = vadd.f32 %v1323, %v1394
  %v1398 = vxor.u32 %v1397, 2147483648
  %v1399 = vmul.f32 %v1398, 1.442695
  %v1400 = vpow.pop %v1399
  %v1401 = vadd.f32 %v1400, 1.0
  %v1402 = vrcp.pop %v1401
  %v1403 = vmul.f32 1.0, %v1402
  %1405 = vrot.lane.b32.xlu0 %v1394, 64
  %v1406 = vpop.permute.xlu0 %1405
  %v1408 = vmul.f32 %v1403, %v1406
  %1410 = vrot.lane.b32.xlu0 %v1408, 64
  %v1411 = vpop.permute.xlu0 %1410
  %v1413 = vadd.f32 %v1323, %v1411
  %v1414 = vtanh.pop %v1413
  %v1415 = vsub.f32 1.0, %v1403
  %1417 = vrot.lane.b32.xlu0 %v1414, 96
  %v1418 = vpop.permute.xlu0 %1417
  %v1420 = vmul.f32 %v1415, %v1418
  %1421 = vrot.lane.b32.xlu0 %v1322, 32
  %v1422 = vpop.permute.xlu0 %1421
  %v1424 = vmul.f32 %v1403, %v1422
  %v1425 = vadd.f32 %v1420, %v1424
  %v1426 = vld [vmem:[#allocation3 + $0x8] sm:$0xff]
  %1428 = vrot.lane.b32.xlu0 %v1425, 96
  %v1429 = vpop.permute.xlu0 %1428
  %v1430 = vsel %vm273, %v1429, 0
  %1432 = vmatprep.subr.mxu0 0.0
  %1433 = vmatpush1.msra.mxu0 0.0
  %1434 = vmatprep.subr.mxu0 0.0
  %1435 = vmatpush1.msra.mxu0 0.0
  %1436 = vmatprep.subr.mxu0 0.0
  %1437 = vmatpush1.msra.mxu0 0.0
  %1438 = vmatprep.subr.mxu0 0.0
  %1439 = vmatpush1.msra.mxu0 0.0
  %1440 = vmatprep.subr.mxu0 0.0
  %1441 = vmatpush1.msra.mxu0 0.0
  %1442 = vmatprep.subr.mxu0 0.0
  %1443 = vmatpush1.msra.mxu0 0.0
  %1444 = vmatprep.subr.mxu0 0.0
  %1445 = vmatpush1.msra.mxu0 0.0
  %1446 = vmatprep.subr.mxu0 0.0
  %1447 = vmatpush1.msra.mxu0 0.0
  %1448 = vmatprep.subr.mxu0 0.0
  %1449 = vmatpush1.msra.mxu0 0.0
  %1450 = vmatprep.subr.mxu0 0.0
  %1451 = vmatpush1.msra.mxu0 0.0
  %1452 = vmatprep.subr.mxu0 0.0
  %1453 = vmatpush1.msra.mxu0 0.0
  %1454 = vmatprep.subr.mxu0 0.0
  %1455 = vmatpush1.msra.mxu0 0.0
  %1456 = vmatprep.subr.mxu0 0.0
  %1457 = vmatpush1.msra.mxu0 %v305
  %1458 = vmatprep.subr.mxu0 0.0
  %1459 = vmatpush1.msra.mxu0 %v304
  %1460 = vmatprep.subr.mxu0 0.0
  %1461 = vmatpush1.msra.mxu0 %v303
  %1462 = vmatprep.subr.mxu0 0.0
  %1463 = vmatpush1.msra.mxu0 %v302
  %1464 = vmatprep.subr.mxu0 0.0
  %1465 = vmatpush2.msra.mxu0 0.0
  %1466 = vmatprep.subr.mxu0 0.0
  %1467 = vmatpush2.msra.mxu0 0.0
  %1468 = vmatprep.subr.mxu0 0.0
  %1469 = vmatpush2.msra.mxu0 0.0
  %1470 = vmatprep.subr.mxu0 0.0
  %1471 = vmatpush2.msra.mxu0 0.0
  %1472 = vmatprep.subr.mxu0 0.0
  %1473 = vmatpush2.msra.mxu0 0.0
  %1474 = vmatprep.subr.mxu0 0.0
  %1475 = vmatpush2.msra.mxu0 0.0
  %1476 = vmatprep.subr.mxu0 0.0
  %1477 = vmatpush2.msra.mxu0 0.0
  %1478 = vmatprep.subr.mxu0 0.0
  %1479 = vmatpush2.msra.mxu0 0.0
  %1480 = vmatprep.subr.mxu0 0.0
  %1481 = vmatpush2.msra.mxu0 0.0
  %1482 = vmatprep.subr.mxu0 0.0
  %1483 = vmatpush2.msra.mxu0 0.0
  %1484 = vmatprep.subr.mxu0 0.0
  %1485 = vmatpush2.msra.mxu0 0.0
  %1486 = vmatprep.subr.mxu0 0.0
  %1487 = vmatpush2.msra.mxu0 0.0
  %1488 = vmatprep.subr.mxu0 0.0
  %1489 = vmatpush2.msra.mxu0 0.0
  %1490 = vmatprep.subr.mxu0 0.0
  %1491 = vmatpush2.msra.mxu0 0.0
  %1492 = vmatprep.subr.mxu0 0.0
  %1493 = vmatpush2.msra.mxu0 0.0
  %1494 = vmatprep.subr.mxu0 0.0
  %1495 = vmatpush2.msra.mxu0 0.0
  %1496 = vmatprep.mubr.f32.mxu0 0.0
  %1497 = vmatmul.mubr.f32.gmra.mxu0 %v1430
  %v1498 = vpop.f32.mrf.mxu0
  %v1499 = vadd.f32 %v318, %v1498
  %v1500 = vpop.f32.mrf.mxu0
  %1501 = vdwg.mxu0
  %v1502 = vadd.f32 %v1426, %v1499
  %v1503 = vxor.u32 %v1502, 2147483648
  %v1504 = vmul.f32 %v1503, 1.442695
  %v1505 = vpow.pop %v1504
  %v1506 = vadd.f32 %v1505, 1.0
  %v1507 = vrcp.pop %v1506
  %v1508 = vmul.f32 1.0, %v1507
  %1510 = vrot.lane.b32.xlu0 %v1499, 64
  %v1511 = vpop.permute.xlu0 %1510
  %v1513 = vmul.f32 %v1508, %v1511
  %1515 = vrot.lane.b32.xlu0 %v1513, 64
  %v1516 = vpop.permute.xlu0 %1515
  %v1518 = vadd.f32 %v1426, %v1516
  %v1519 = vtanh.pop %v1518
  %v1520 = vsub.f32 1.0, %v1508
  %1522 = vrot.lane.b32.xlu0 %v1519, 96
  %v1523 = vpop.permute.xlu0 %1522
  %v1525 = vmul.f32 %v1520, %v1523
  %v1526 = vmul.f32 %v1508, %v1425
  %v1527 = vadd.f32 %v1525, %v1526
  %v1528 = vld [vmem:[#allocation3 + $0x10] sm:$0xff]
  %1530 = vrot.lane.b32.xlu0 %v1527, 96
  %v1531 = vpop.permute.xlu0 %1530
  %v1532 = vsel %vm273, %v1531, 0
  %1534 = vmatprep.subr.mxu0 0.0
  %1535 = vmatpush1.msra.mxu0 0.0
  %1536 = vmatprep.subr.mxu0 0.0
  %1537 = vmatpush1.msra.mxu0 0.0
  %1538 = vmatprep.subr.mxu0 0.0
  %1539 = vmatpush1.msra.mxu0 0.0
  %1540 = vmatprep.subr.mxu0 0.0
  %1541 = vmatpush1.msra.mxu0 0.0
  %1542 = vmatprep.subr.mxu0 0.0
  %1543 = vmatpush1.msra.mxu0 0.0
  %1544 = vmatprep.subr.mxu0 0.0
  %1545 = vmatpush1.msra.mxu0 0.0
  %1546 = vmatprep.subr.mxu0 0.0
  %1547 = vmatpush1.msra.mxu0 0.0
  %1548 = vmatprep.subr.mxu0 0.0
  %1549 = vmatpush1.msra.mxu0 0.0
  %1550 = vmatprep.subr.mxu0 0.0
  %1551 = vmatpush1.msra.mxu0 0.0
  %1552 = vmatprep.subr.mxu0 0.0
  %1553 = vmatpush1.msra.mxu0 0.0
  %1554 = vmatprep.subr.mxu0 0.0
  %1555 = vmatpush1.msra.mxu0 0.0
  %1556 = vmatprep.subr.mxu0 0.0
  %1557 = vmatpush1.msra.mxu0 0.0
  %1558 = vmatprep.subr.mxu0 0.0
  %1559 = vmatpush1.msra.mxu0 %v305
  %1560 = vmatprep.subr.mxu0 0.0
  %1561 = vmatpush1.msra.mxu0 %v304
  %1562 = vmatprep.subr.mxu0 0.0
  %1563 = vmatpush1.msra.mxu0 %v303
  %1564 = vmatprep.subr.mxu0 0.0
  %1565 = vmatpush1.msra.mxu0 %v302
  %1566 = vmatprep.subr.mxu0 0.0
  %1567 = vmatpush2.msra.mxu0 0.0
  %1568 = vmatprep.subr.mxu0 0.0
  %1569 = vmatpush2.msra.mxu0 0.0
  %1570 = vmatprep.subr.mxu0 0.0
  %1571 = vmatpush2.msra.mxu0 0.0
  %1572 = vmatprep.subr.mxu0 0.0
  %1573 = vmatpush2.msra.mxu0 0.0
  %1574 = vmatprep.subr.mxu0 0.0
  %1575 = vmatpush2.msra.mxu0 0.0
  %1576 = vmatprep.subr.mxu0 0.0
  %1577 = vmatpush2.msra.mxu0 0.0
  %1578 = vmatprep.subr.mxu0 0.0
  %1579 = vmatpush2.msra.mxu0 0.0
  %1580 = vmatprep.subr.mxu0 0.0
  %1581 = vmatpush2.msra.mxu0 0.0
  %1582 = vmatprep.subr.mxu0 0.0
  %1583 = vmatpush2.msra.mxu0 0.0
  %1584 = vmatprep.subr.mxu0 0.0
  %1585 = vmatpush2.msra.mxu0 0.0
  %1586 = vmatprep.subr.mxu0 0.0
  %1587 = vmatpush2.msra.mxu0 0.0
  %1588 = vmatprep.subr.mxu0 0.0
  %1589 = vmatpush2.msra.mxu0 0.0
  %1590 = vmatprep.subr.mxu0 0.0
  %1591 = vmatpush2.msra.mxu0 0.0
  %1592 = vmatprep.subr.mxu0 0.0
  %1593 = vmatpush2.msra.mxu0 0.0
  %1594 = vmatprep.subr.mxu0 0.0
  %1595 = vmatpush2.msra.mxu0 0.0
  %1596 = vmatprep.subr.mxu0 0.0
  %1597 = vmatpush2.msra.mxu0 0.0
  %1598 = vmatprep.mubr.f32.mxu0 0.0
  %1599 = vmatmul.mubr.f32.gmra.mxu0 %v1532
  %v1600 = vpop.f32.mrf.mxu0
  %v1601 = vadd.f32 %v318, %v1600
  %v1602 = vpop.f32.mrf.mxu0
  %1603 = vdwg.mxu0
  %v1604 = vadd.f32 %v1528, %v1601
  %v1605 = vxor.u32 %v1604, 2147483648
  %v1606 = vmul.f32 %v1605, 1.442695
  %v1607 = vpow.pop %v1606
  %v1608 = vadd.f32 %v1607, 1.0
  %v1609 = vrcp.pop %v1608
  %v1610 = vmul.f32 1.0, %v1609
  %1612 = vrot.lane.b32.xlu0 %v1601, 64
  %v1613 = vpop.permute.xlu0 %1612
  %v1615 = vmul.f32 %v1610, %v1613
  %1617 = vrot.lane.b32.xlu0 %v1615, 64
  %v1618 = vpop.permute.xlu0 %1617
  %v1620 = vadd.f32 %v1528, %v1618
  %v1621 = vtanh.pop %v1620
  %v1622 = vsub.f32 1.0, %v1610
  %1624 = vrot.lane.b32.xlu0 %v1621, 96
  %v1625 = vpop.permute.xlu0 %1624
  %v1627 = vmul.f32 %v1622, %v1625
  %v1628 = vmul.f32 %v1610, %v1527
  %v1629 = vadd.f32 %v1627, %v1628
  %v1630 = vld [vmem:[#allocation3 + $0x18] sm:$0xff]
  %1632 = vrot.lane.b32.xlu0 %v1629, 96
  %v1633 = vpop.permute.xlu0 %1632
  %v1634 = vsel %vm273, %v1633, 0
  %1636 = vmatprep.subr.mxu0 0.0
  %1637 = vmatpush1.msra.mxu0 0.0
  %1638 = vmatprep.subr.mxu0 0.0
  %1639 = vmatpush1.msra.mxu0 0.0
  %1640 = vmatprep.subr.mxu0 0.0
  %1641 = vmatpush1.msra.mxu0 0.0
  %1642 = vmatprep.subr.mxu0 0.0
  %1643 = vmatpush1.msra.mxu0 0.0
  %1644 = vmatprep.subr.mxu0 0.0
  %1645 = vmatpush1.msra.mxu0 0.0
  %1646 = vmatprep.subr.mxu0 0.0
  %1647 = vmatpush1.msra.mxu0 0.0
  %1648 = vmatprep.subr.mxu0 0.0
  %1649 = vmatpush1.msra.mxu0 0.0
  %1650 = vmatprep.subr.mxu0 0.0
  %1651 = vmatpush1.msra.mxu0 0.0
  %1652 = vmatprep.subr.mxu0 0.0
  %1653 = vmatpush1.msra.mxu0 0.0
  %1654 = vmatprep.subr.mxu0 0.0
  %1655 = vmatpush1.msra.mxu0 0.0
  %1656 = vmatprep.subr.mxu0 0.0
  %1657 = vmatpush1.msra.mxu0 0.0
  %1658 = vmatprep.subr.mxu0 0.0
  %1659 = vmatpush1.msra.mxu0 0.0
  %1660 = vmatprep.subr.mxu0 0.0
  %1661 = vmatpush1.msra.mxu0 %v305
  %1662 = vmatprep.subr.mxu0 0.0
  %1663 = vmatpush1.msra.mxu0 %v304
  %1664 = vmatprep.subr.mxu0 0.0
  %1665 = vmatpush1.msra.mxu0 %v303
  %1666 = vmatprep.subr.mxu0 0.0
  %1667 = vmatpush1.msra.mxu0 %v302
  %1668 = vmatprep.subr.mxu0 0.0
  %1669 = vmatpush2.msra.mxu0 0.0
  %1670 = vmatprep.subr.mxu0 0.0
  %1671 = vmatpush2.msra.mxu0 0.0
  %1672 = vmatprep.subr.mxu0 0.0
  %1673 = vmatpush2.msra.mxu0 0.0
  %1674 = vmatprep.subr.mxu0 0.0
  %1675 = vmatpush2.msra.mxu0 0.0
  %1676 = vmatprep.subr.mxu0 0.0
  %1677 = vmatpush2.msra.mxu0 0.0
  %1678 = vmatprep.subr.mxu0 0.0
  %1679 = vmatpush2.msra.mxu0 0.0
  %1680 = vmatprep.subr.mxu0 0.0
  %1681 = vmatpush2.msra.mxu0 0.0
  %1682 = vmatprep.subr.mxu0 0.0
  %1683 = vmatpush2.msra.mxu0 0.0
  %1684 = vmatprep.subr.mxu0 0.0
  %1685 = vmatpush2.msra.mxu0 0.0
  %1686 = vmatprep.subr.mxu0 0.0
  %1687 = vmatpush2.msra.mxu0 0.0
  %1688 = vmatprep.subr.mxu0 0.0
  %1689 = vmatpush2.msra.mxu0 0.0
  %1690 = vmatprep.subr.mxu0 0.0
  %1691 = vmatpush2.msra.mxu0 0.0
  %1692 = vmatprep.subr.mxu0 0.0
  %1693 = vmatpush2.msra.mxu0 0.0
  %1694 = vmatprep.subr.mxu0 0.0
  %1695 = vmatpush2.msra.mxu0 0.0
  %1696 = vmatprep.subr.mxu0 0.0
  %1697 = vmatpush2.msra.mxu0 0.0
  %1698 = vmatprep.subr.mxu0 0.0
  %1699 = vmatpush2.msra.mxu0 0.0
  %1700 = vmatprep.mubr.f32.mxu0 0.0
  %1701 = vmatmul.mubr.f32.gmra.mxu0 %v1634
  %v1702 = vpop.f32.mrf.mxu0
  %v1703 = vadd.f32 %v318, %v1702
  %v1704 = vpop.f32.mrf.mxu0
  %1705 = vdwg.mxu0
  %v1706 = vadd.f32 %v1630, %v1703
  %v1707 = vxor.u32 %v1706, 2147483648
  %v1708 = vmul.f32 %v1707, 1.442695
  %v1709 = vpow.pop %v1708
  %v1710 = vadd.f32 %v1709, 1.0
  %v1711 = vrcp.pop %v1710
  %v1712 = vmul.f32 1.0, %v1711
  %1714 = vrot.lane.b32.xlu0 %v1703, 64
  %v1715 = vpop.permute.xlu0 %1714
  %v1717 = vmul.f32 %v1712, %v1715
  %1719 = vrot.lane.b32.xlu0 %v1717, 64
  %v1720 = vpop.permute.xlu0 %1719
  %v1722 = vadd.f32 %v1630, %v1720
  %v1723 = vtanh.pop %v1722
  %v1724 = vsub.f32 1.0, %v1712
  %1726 = vrot.lane.b32.xlu0 %v1723, 96
  %v1727 = vpop.permute.xlu0 %1726
  %v1729 = vmul.f32 %v1724, %v1727
  %v1730 = vmul.f32 %v1712, %v1629
  %v1731 = vadd.f32 %v1729, %v1730
  %v1732 = vld [vmem:[#allocation3 + $0x20] sm:$0xff]
  %1734 = vrot.lane.b32.xlu0 %v1731, 96
  %v1735 = vpop.permute.xlu0 %1734
  %v1736 = vsel %vm273, %v1735, 0
  %1738 = vmatprep.subr.mxu0 0.0
  %1739 = vmatpush1.msra.mxu0 0.0
  %1740 = vmatprep.subr.mxu0 0.0
  %1741 = vmatpush1.msra.mxu0 0.0
  %1742 = vmatprep.subr.mxu0 0.0
  %1743 = vmatpush1.msra.mxu0 0.0
  %1744 = vmatprep.subr.mxu0 0.0
  %1745 = vmatpush1.msra.mxu0 0.0
  %1746 = vmatprep.subr.mxu0 0.0
  %1747 = vmatpush1.msra.mxu0 0.0
  %1748 = vmatprep.subr.mxu0 0.0
  %1749 = vmatpush1.msra.mxu0 0.0
  %1750 = vmatprep.subr.mxu0 0.0
  %1751 = vmatpush1.msra.mxu0 0.0
  %1752 = vmatprep.subr.mxu0 0.0
  %1753 = vmatpush1.msra.mxu0 0.0
  %1754 = vmatprep.subr.mxu0 0.0
  %1755 = vmatpush1.msra.mxu0 0.0
  %1756 = vmatprep.subr.mxu0 0.0
  %1757 = vmatpush1.msra.mxu0 0.0
  %1758 = vmatprep.subr.mxu0 0.0
  %1759 = vmatpush1.msra.mxu0 0.0
  %1760 = vmatprep.subr.mxu0 0.0
  %1761 = vmatpush1.msra.mxu0 0.0
  %1762 = vmatprep.subr.mxu0 0.0
  %1763 = vmatpush1.msra.mxu0 %v305
  %1764 = vmatprep.subr.mxu0 0.0
  %1765 = vmatpush1.msra.mxu0 %v304
  %1766 = vmatprep.subr.mxu0 0.0
  %1767 = vmatpush1.msra.mxu0 %v303
  %1768 = vmatprep.subr.mxu0 0.0
  %1769 = vmatpush1.msra.mxu0 %v302
  %1770 = vmatprep.subr.mxu0 0.0
  %1771 = vmatpush2.msra.mxu0 0.0
  %1772 = vmatprep.subr.mxu0 0.0
  %1773 = vmatpush2.msra.mxu0 0.0
  %1774 = vmatprep.subr.mxu0 0.0
  %1775 = vmatpush2.msra.mxu0 0.0
  %1776 = vmatprep.subr.mxu0 0.0
  %1777 = vmatpush2.msra.mxu0 0.0
  %1778 = vmatprep.subr.mxu0 0.0
  %1779 = vmatpush2.msra.mxu0 0.0
  %1780 = vmatprep.subr.mxu0 0.0
  %1781 = vmatpush2.msra.mxu0 0.0
  %1782 = vmatprep.subr.mxu0 0.0
  %1783 = vmatpush2.msra.mxu0 0.0
  %1784 = vmatprep.subr.mxu0 0.0
  %1785 = vmatpush2.msra.mxu0 0.0
  %1786 = vmatprep.subr.mxu0 0.0
  %1787 = vmatpush2.msra.mxu0 0.0
  %1788 = vmatprep.subr.mxu0 0.0
  %1789 = vmatpush2.msra.mxu0 0.0
  %1790 = vmatprep.subr.mxu0 0.0
  %1791 = vmatpush2.msra.mxu0 0.0
  %1792 = vmatprep.subr.mxu0 0.0
  %1793 = vmatpush2.msra.mxu0 0.0
  %1794 = vmatprep.subr.mxu0 0.0
  %1795 = vmatpush2.msra.mxu0 0.0
  %1796 = vmatprep.subr.mxu0 0.0
  %1797 = vmatpush2.msra.mxu0 0.0
  %1798 = vmatprep.subr.mxu0 0.0
  %1799 = vmatpush2.msra.mxu0 0.0
  %1800 = vmatprep.subr.mxu0 0.0
  %1801 = vmatpush2.msra.mxu0 0.0
  %1802 = vmatprep.mubr.f32.mxu0 0.0
  %1803 = vmatmul.mubr.f32.gmra.mxu0 %v1736
  %v1804 = vpop.f32.mrf.mxu0
  %v1805 = vadd.f32 %v318, %v1804
  %v1806 = vpop.f32.mrf.mxu0
  %1807 = vdwg.mxu0
  %v1808 = vadd.f32 %v1732, %v1805
  %v1809 = vxor.u32 %v1808, 2147483648
  %v1810 = vmul.f32 %v1809, 1.442695
  %v1811 = vpow.pop %v1810
  %v1812 = vadd.f32 %v1811, 1.0
  %v1813 = vrcp.pop %v1812
  %v1814 = vmul.f32 1.0, %v1813
  %1816 = vrot.lane.b32.xlu0 %v1805, 64
  %v1817 = vpop.permute.xlu0 %1816
  %v1819 = vmul.f32 %v1814, %v1817
  %1821 = vrot.lane.b32.xlu0 %v1819, 64
  %v1822 = vpop.permute.xlu0 %1821
  %v1824 = vadd.f32 %v1732, %v1822
  %v1825 = vtanh.pop %v1824
  %v1826 = vsub.f32 1.0, %v1814
  %1828 = vrot.lane.b32.xlu0 %v1825, 96
  %v1829 = vpop.permute.xlu0 %1828
  %v1831 = vmul.f32 %v1826, %v1829
  %v1832 = vmul.f32 %v1814, %v1731
  %v1833 = vadd.f32 %v1831, %v1832
  %v1834 = vld [vmem:[#allocation3 + $0x28] sm:$0xff]
  %1836 = vrot.lane.b32.xlu0 %v1833, 96
  %v1837 = vpop.permute.xlu0 %1836
  %v1838 = vsel %vm273, %v1837, 0
  %1840 = vmatprep.subr.mxu0 0.0
  %1841 = vmatpush1.msra.mxu0 0.0
  %1842 = vmatprep.subr.mxu0 0.0
  %1843 = vmatpush1.msra.mxu0 0.0
  %1844 = vmatprep.subr.mxu0 0.0
  %1845 = vmatpush1.msra.mxu0 0.0
  %1846 = vmatprep.subr.mxu0 0.0
  %1847 = vmatpush1.msra.mxu0 0.0
  %1848 = vmatprep.subr.mxu0 0.0
  %1849 = vmatpush1.msra.mxu0 0.0
  %1850 = vmatprep.subr.mxu0 0.0
  %1851 = vmatpush1.msra.mxu0 0.0
  %1852 = vmatprep.subr.mxu0 0.0
  %1853 = vmatpush1.msra.mxu0 0.0
  %1854 = vmatprep.subr.mxu0 0.0
  %1855 = vmatpush1.msra.mxu0 0.0
  %1856 = vmatprep.subr.mxu0 0.0
  %1857 = vmatpush1.msra.mxu0 0.0
  %1858 = vmatprep.subr.mxu0 0.0
  %1859 = vmatpush1.msra.mxu0 0.0
  %1860 = vmatprep.subr.mxu0 0.0
  %1861 = vmatpush1.msra.mxu0 0.0
  %1862 = vmatprep.subr.mxu0 0.0
  %1863 = vmatpush1.msra.mxu0 0.0
  %1864 = vmatprep.subr.mxu0 0.0
  %1865 = vmatpush1.msra.mxu0 %v305
  %1866 = vmatprep.subr.mxu0 0.0
  %1867 = vmatpush1.msra.mxu0 %v304
  %1868 = vmatprep.subr.mxu0 0.0
  %1869 = vmatpush1.msra.mxu0 %v303
  %1870 = vmatprep.subr.mxu0 0.0
  %1871 = vmatpush1.msra.mxu0 %v302
  %1872 = vmatprep.subr.mxu0 0.0
  %1873 = vmatpush2.msra.mxu0 0.0
  %1874 = vmatprep.subr.mxu0 0.0
  %1875 = vmatpush2.msra.mxu0 0.0
  %1876 = vmatprep.subr.mxu0 0.0
  %1877 = vmatpush2.msra.mxu0 0.0
  %1878 = vmatprep.subr.mxu0 0.0
  %1879 = vmatpush2.msra.mxu0 0.0
  %1880 = vmatprep.subr.mxu0 0.0
  %1881 = vmatpush2.msra.mxu0 0.0
  %1882 = vmatprep.subr.mxu0 0.0
  %1883 = vmatpush2.msra.mxu0 0.0
  %1884 = vmatprep.subr.mxu0 0.0
  %1885 = vmatpush2.msra.mxu0 0.0
  %1886 = vmatprep.subr.mxu0 0.0
  %1887 = vmatpush2.msra.mxu0 0.0
  %1888 = vmatprep.subr.mxu0 0.0
  %1889 = vmatpush2.msra.mxu0 0.0
  %1890 = vmatprep.subr.mxu0 0.0
  %1891 = vmatpush2.msra.mxu0 0.0
  %1892 = vmatprep.subr.mxu0 0.0
  %1893 = vmatpush2.msra.mxu0 0.0
  %1894 = vmatprep.subr.mxu0 0.0
  %1895 = vmatpush2.msra.mxu0 0.0
  %1896 = vmatprep.subr.mxu0 0.0
  %1897 = vmatpush2.msra.mxu0 0.0
  %1898 = vmatprep.subr.mxu0 0.0
  %1899 = vmatpush2.msra.mxu0 0.0
  %1900 = vmatprep.subr.mxu0 0.0
  %1901 = vmatpush2.msra.mxu0 0.0
  %1902 = vmatprep.subr.mxu0 0.0
  %1903 = vmatpush2.msra.mxu0 0.0
  %1904 = vmatprep.mubr.f32.mxu0 0.0
  %1905 = vmatmul.mubr.f32.gmra.mxu0 %v1838
  %v1906 = vpop.f32.mrf.mxu0
  %v1907 = vadd.f32 %v318, %v1906
  %v1908 = vpop.f32.mrf.mxu0
  %1909 = vdwg.mxu0
  %v1910 = vadd.f32 %v1834, %v1907
  %v1911 = vxor.u32 %v1910, 2147483648
  %v1912 = vmul.f32 %v1911, 1.442695
  %v1913 = vpow.pop %v1912
  %v1914 = vadd.f32 %v1913, 1.0
  %v1915 = vrcp.pop %v1914
  %v1916 = vmul.f32 1.0, %v1915
  %1918 = vrot.lane.b32.xlu0 %v1907, 64
  %v1919 = vpop.permute.xlu0 %1918
  %v1921 = vmul.f32 %v1916, %v1919
  %1923 = vrot.lane.b32.xlu0 %v1921, 64
  %v1924 = vpop.permute.xlu0 %1923
  %v1926 = vadd.f32 %v1834, %v1924
  %v1927 = vtanh.pop %v1926
  %v1928 = vsub.f32 1.0, %v1916
  %1930 = vrot.lane.b32.xlu0 %v1927, 96
  %v1931 = vpop.permute.xlu0 %1930
  %v1933 = vmul.f32 %v1928, %v1931
  %v1934 = vmul.f32 %v1916, %v1833
  %v1935 = vadd.f32 %v1933, %v1934
  %v1936 = vld [vmem:[#allocation3 + $0x30] sm:$0xff]
  %1938 = vrot.lane.b32.xlu0 %v1935, 96
  %v1939 = vpop.permute.xlu0 %1938
  %v1940 = vsel %vm273, %v1939, 0
  %1942 = vmatprep.subr.mxu0 0.0
  %1943 = vmatpush1.msra.mxu0 0.0
  %1944 = vmatprep.subr.mxu0 0.0
  %1945 = vmatpush1.msra.mxu0 0.0
  %1946 = vmatprep.subr.mxu0 0.0
  %1947 = vmatpush1.msra.mxu0 0.0
  %1948 = vmatprep.subr.mxu0 0.0
  %1949 = vmatpush1.msra.mxu0 0.0
  %1950 = vmatprep.subr.mxu0 0.0
  %1951 = vmatpush1.msra.mxu0 0.0
  %1952 = vmatprep.subr.mxu0 0.0
  %1953 = vmatpush1.msra.mxu0 0.0
  %1954 = vmatprep.subr.mxu0 0.0
  %1955 = vmatpush1.msra.mxu0 0.0
  %1956 = vmatprep.subr.mxu0 0.0
  %1957 = vmatpush1.msra.mxu0 0.0
  %1958 = vmatprep.subr.mxu0 0.0
  %1959 = vmatpush1.msra.mxu0 0.0
  %1960 = vmatprep.subr.mxu0 0.0
  %1961 = vmatpush1.msra.mxu0 0.0
  %1962 = vmatprep.subr.mxu0 0.0
  %1963 = vmatpush1.msra.mxu0 0.0
  %1964 = vmatprep.subr.mxu0 0.0
  %1965 = vmatpush1.msra.mxu0 0.0
  %1966 = vmatprep.subr.mxu0 0.0
  %1967 = vmatpush1.msra.mxu0 %v305
  %1968 = vmatprep.subr.mxu0 0.0
  %1969 = vmatpush1.msra.mxu0 %v304
  %1970 = vmatprep.subr.mxu0 0.0
  %1971 = vmatpush1.msra.mxu0 %v303
  %1972 = vmatprep.subr.mxu0 0.0
  %1973 = vmatpush1.msra.mxu0 %v302
  %1974 = vmatprep.subr.mxu0 0.0
  %1975 = vmatpush2.msra.mxu0 0.0
  %1976 = vmatprep.subr.mxu0 0.0
  %1977 = vmatpush2.msra.mxu0 0.0
  %1978 = vmatprep.subr.mxu0 0.0
  %1979 = vmatpush2.msra.mxu0 0.0
  %1980 = vmatprep.subr.mxu0 0.0
  %1981 = vmatpush2.msra.mxu0 0.0
  %1982 = vmatprep.subr.mxu0 0.0
  %1983 = vmatpush2.msra.mxu0 0.0
  %1984 = vmatprep.subr.mxu0 0.0
  %1985 = vmatpush2.msra.mxu0 0.0
  %1986 = vmatprep.subr.mxu0 0.0
  %1987 = vmatpush2.msra.mxu0 0.0
  %1988 = vmatprep.subr.mxu0 0.0
  %1989 = vmatpush2.msra.mxu0 0.0
  %1990 = vmatprep.subr.mxu0 0.0
  %1991 = vmatpush2.msra.mxu0 0.0
  %1992 = vmatprep.subr.mxu0 0.0
  %1993 = vmatpush2.msra.mxu0 0.0
  %1994 = vmatprep.subr.mxu0 0.0
  %1995 = vmatpush2.msra.mxu0 0.0
  %1996 = vmatprep.subr.mxu0 0.0
  %1997 = vmatpush2.msra.mxu0 0.0
  %1998 = vmatprep.subr.mxu0 0.0
  %1999 = vmatpush2.msra.mxu0 0.0
  %2000 = vmatprep.subr.mxu0 0.0
  %2001 = vmatpush2.msra.mxu0 0.0
  %2002 = vmatprep.subr.mxu0 0.0
  %2003 = vmatpush2.msra.mxu0 0.0
  %2004 = vmatprep.subr.mxu0 0.0
  %2005 = vmatpush2.msra.mxu0 0.0
  %2006 = vmatprep.mubr.f32.mxu0 0.0
  %2007 = vmatmul.mubr.f32.gmra.mxu0 %v1940
  %v2008 = vpop.f32.mrf.mxu0
  %v2009 = vadd.f32 %v318, %v2008
  %v2010 = vpop.f32.mrf.mxu0
  %2011 = vdwg.mxu0
  %v2012 = vadd.f32 %v1936, %v2009
  %v2013 = vxor.u32 %v2012, 2147483648
  %v2014 = vmul.f32 %v2013, 1.442695
  %v2015 = vpow.pop %v2014
  %v2016 = vadd.f32 %v2015, 1.0
  %v2017 = vrcp.pop %v2016
  %v2018 = vmul.f32 1.0, %v2017
  %2020 = vrot.lane.b32.xlu0 %v2009, 64
  %v2021 = vpop.permute.xlu0 %2020
  %v2023 = vmul.f32 %v2018, %v2021
  %2025 = vrot.lane.b32.xlu0 %v2023, 64
  %v2026 = vpop.permute.xlu0 %2025
  %v2028 = vadd.f32 %v1936, %v2026
  %v2029 = vtanh.pop %v2028
  %v2030 = vsub.f32 1.0, %v2018
  %2032 = vrot.lane.b32.xlu0 %v2029, 96
  %v2033 = vpop.permute.xlu0 %2032
  %v2035 = vmul.f32 %v2030, %v2033
  %v2036 = vmul.f32 %v2018, %v1935
  %v2037 = vadd.f32 %v2035, %v2036
  %v2038 = vld [vmem:[#allocation3 + $0x38] sm:$0xff]
  %2040 = vrot.lane.b32.xlu0 %v2037, 96
  %v2041 = vpop.permute.xlu0 %2040
  %v2042 = vsel %vm273, %v2041, 0
  %2044 = vmatprep.subr.mxu0 0.0
  %2045 = vmatpush1.msra.mxu0 0.0
  %2046 = vmatprep.subr.mxu0 0.0
  %2047 = vmatpush1.msra.mxu0 0.0
  %2048 = vmatprep.subr.mxu0 0.0
  %2049 = vmatpush1.msra.mxu0 0.0
  %2050 = vmatprep.subr.mxu0 0.0
  %2051 = vmatpush1.msra.mxu0 0.0
  %2052 = vmatprep.subr.mxu0 0.0
  %2053 = vmatpush1.msra.mxu0 0.0
  %2054 = vmatprep.subr.mxu0 0.0
  %2055 = vmatpush1.msra.mxu0 0.0
  %2056 = vmatprep.subr.mxu0 0.0
  %2057 = vmatpush1.msra.mxu0 0.0
  %2058 = vmatprep.subr.mxu0 0.0
  %2059 = vmatpush1.msra.mxu0 0.0
  %2060 = vmatprep.subr.mxu0 0.0
  %2061 = vmatpush1.msra.mxu0 0.0
  %2062 = vmatprep.subr.mxu0 0.0
  %2063 = vmatpush1.msra.mxu0 0.0
  %2064 = vmatprep.subr.mxu0 0.0
  %2065 = vmatpush1.msra.mxu0 0.0
  %2066 = vmatprep.subr.mxu0 0.0
  %2067 = vmatpush1.msra.mxu0 0.0
  %2068 = vmatprep.subr.mxu0 0.0
  %2069 = vmatpush1.msra.mxu0 %v305
  %2070 = vmatprep.subr.mxu0 0.0
  %2071 = vmatpush1.msra.mxu0 %v304
  %2072 = vmatprep.subr.mxu0 0.0
  %2073 = vmatpush1.msra.mxu0 %v303
  %2074 = vmatprep.subr.mxu0 0.0
  %2075 = vmatpush1.msra.mxu0 %v302
  %2076 = vmatprep.subr.mxu0 0.0
  %2077 = vmatpush2.msra.mxu0 0.0
  %2078 = vmatprep.subr.mxu0 0.0
  %2079 = vmatpush2.msra.mxu0 0.0
  %2080 = vmatprep.subr.mxu0 0.0
  %2081 = vmatpush2.msra.mxu0 0.0
  %2082 = vmatprep.subr.mxu0 0.0
  %2083 = vmatpush2.msra.mxu0 0.0
  %2084 = vmatprep.subr.mxu0 0.0
  %2085 = vmatpush2.msra.mxu0 0.0
  %2086 = vmatprep.subr.mxu0 0.0
  %2087 = vmatpush2.msra.mxu0 0.0
  %2088 = vmatprep.subr.mxu0 0.0
  %2089 = vmatpush2.msra.mxu0 0.0
  %2090 = vmatprep.subr.mxu0 0.0
  %2091 = vmatpush2.msra.mxu0 0.0
  %2092 = vmatprep.subr.mxu0 0.0
  %2093 = vmatpush2.msra.mxu0 0.0
  %2094 = vmatprep.subr.mxu0 0.0
  %2095 = vmatpush2.msra.mxu0 0.0
  %2096 = vmatprep.subr.mxu0 0.0
  %2097 = vmatpush2.msra.mxu0 0.0
  %2098 = vmatprep.subr.mxu0 0.0
  %2099 = vmatpush2.msra.mxu0 0.0
  %2100 = vmatprep.subr.mxu0 0.0
  %2101 = vmatpush2.msra.mxu0 0.0
  %2102 = vmatprep.subr.mxu0 0.0
  %2103 = vmatpush2.msra.mxu0 0.0
  %2104 = vmatprep.subr.mxu0 0.0
  %2105 = vmatpush2.msra.mxu0 0.0
  %2106 = vmatprep.subr.mxu0 0.0
  %2107 = vmatpush2.msra.mxu0 0.0
  %2108 = vmatprep.mubr.f32.mxu0 0.0
  %2109 = vmatmul.mubr.f32.gmra.mxu0 %v2042
  %v2110 = vpop.f32.mrf.mxu0
  %v2111 = vadd.f32 %v318, %v2110
  %v2112 = vpop.f32.mrf.mxu0
  %2113 = vdwg.mxu0
  %v2114 = vadd.f32 %v2038, %v2111
  %v2115 = vxor.u32 %v2114, 2147483648
  %v2116 = vmul.f32 %v2115, 1.442695
  %v2117 = vpow.pop %v2116
  %v2118 = vadd.f32 %v2117, 1.0
  %v2119 = vrcp.pop %v2118
  %v2120 = vmul.f32 1.0, %v2119
  %2122 = vrot.lane.b32.xlu0 %v2111, 64
  %v2123 = vpop.permute.xlu0 %2122
  %v2125 = vmul.f32 %v2120, %v2123
  %2127 = vrot.lane.b32.xlu0 %v2125, 64
  %v2128 = vpop.permute.xlu0 %2127
  %v2130 = vadd.f32 %v2038, %v2128
  %v2131 = vtanh.pop %v2130
  %v2132 = vsub.f32 1.0, %v2120
  %2134 = vrot.lane.b32.xlu0 %v2131, 96
  %v2135 = vpop.permute.xlu0 %2134
  %v2137 = vmul.f32 %v2132, %v2135
  %v2138 = vmul.f32 %v2120, %v2037
  %v2139 = vadd.f32 %v2137, %v2138
  %v2140 = vld [vmem:[%s12] sm:$0xff]
  %v2141 = vld [vmem:[%s12 + $0x8] sm:$0xff]
  %v2142 = vld [vmem:[%s12 + $0x10] sm:$0xff]
  %v2143 = vld [vmem:[%s12 + $0x18] sm:$0xff]
  %v2144 = vld [vmem:[%s13] sm:$0x1]
  %v2146 = vlaneseq
  %v2147 = vshrl.u32 %v2146, 7
  %v2148 = vsub.s32 0, %v2147
  %v2149 = vrot.slane %v2144, %v2148
  %2152 = vrot.lane.b32.xlu0 %v2139, 96
  %v2153 = vpop.permute.xlu0 %2152
  %v2154 = vsel %vm273, %v2153, 0
  %2156 = vmatprep.subr.mxu0 0.0
  %2157 = vmatpush1.msra.mxu0 0.0
  %2158 = vmatprep.subr.mxu0 0.0
  %2159 = vmatpush1.msra.mxu0 0.0
  %2160 = vmatprep.subr.mxu0 0.0
  %2161 = vmatpush1.msra.mxu0 0.0
  %2162 = vmatprep.subr.mxu0 0.0
  %2163 = vmatpush1.msra.mxu0 0.0
  %2164 = vmatprep.subr.mxu0 0.0
  %2165 = vmatpush1.msra.mxu0 0.0
  %2166 = vmatprep.subr.mxu0 0.0
  %2167 = vmatpush1.msra.mxu0 0.0
  %2168 = vmatprep.subr.mxu0 0.0
  %2169 = vmatpush1.msra.mxu0 0.0
  %2170 = vmatprep.subr.mxu0 0.0
  %2171 = vmatpush1.msra.mxu0 0.0
  %2172 = vmatprep.subr.mxu0 0.0
  %2173 = vmatpush1.msra.mxu0 0.0
  %2174 = vmatprep.subr.mxu0 0.0
  %2175 = vmatpush1.msra.mxu0 0.0
  %2176 = vmatprep.subr.mxu0 0.0
  %2177 = vmatpush1.msra.mxu0 0.0
  %2178 = vmatprep.subr.mxu0 0.0
  %2179 = vmatpush1.msra.mxu0 0.0
  %2180 = vmatprep.subr.mxu0 0.0
  %2181 = vmatpush1.msra.mxu0 %v2143
  %2182 = vmatprep.subr.mxu0 0.0
  %2183 = vmatpush1.msra.mxu0 %v2142
  %2184 = vmatprep.subr.mxu0 0.0
  %2185 = vmatpush1.msra.mxu0 %v2141
  %2186 = vmatprep.subr.mxu0 0.0
  %2187 = vmatpush1.msra.mxu0 %v2140
  %2188 = vmatprep.subr.mxu0 0.0
  %2189 = vmatpush2.msra.mxu0 0.0
  %2190 = vmatprep.subr.mxu0 0.0
  %2191 = vmatpush2.msra.mxu0 0.0
  %2192 = vmatprep.subr.mxu0 0.0
  %2193 = vmatpush2.msra.mxu0 0.0
  %2194 = vmatprep.subr.mxu0 0.0
  %2195 = vmatpush2.msra.mxu0 0.0
  %2196 = vmatprep.subr.mxu0 0.0
  %2197 = vmatpush2.msra.mxu0 0.0
  %2198 = vmatprep.subr.mxu0 0.0
  %2199 = vmatpush2.msra.mxu0 0.0
  %2200 = vmatprep.subr.mxu0 0.0
  %2201 = vmatpush2.msra.mxu0 0.0
  %2202 = vmatprep.subr.mxu0 0.0
  %2203 = vmatpush2.msra.mxu0 0.0
  %2204 = vmatprep.subr.mxu0 0.0
  %2205 = vmatpush2.msra.mxu0 0.0
  %2206 = vmatprep.subr.mxu0 0.0
  %2207 = vmatpush2.msra.mxu0 0.0
  %2208 = vmatprep.subr.mxu0 0.0
  %2209 = vmatpush2.msra.mxu0 0.0
  %2210 = vmatprep.subr.mxu0 0.0
  %2211 = vmatpush2.msra.mxu0 0.0
  %2212 = vmatprep.subr.mxu0 0.0
  %2213 = vmatpush2.msra.mxu0 0.0
  %2214 = vmatprep.subr.mxu0 0.0
  %2215 = vmatpush2.msra.mxu0 0.0
  %2216 = vmatprep.subr.mxu0 0.0
  %2217 = vmatpush2.msra.mxu0 0.0
  %2218 = vmatprep.subr.mxu0 0.0
  %2219 = vmatpush2.msra.mxu0 0.0
  %2220 = vmatprep.mubr.f32.mxu0 0.0
  %2221 = vmatmul.mubr.f32.gmra.mxu0 %v1430
  %v2222 = vpop.f32.mrf.mxu0
  %v2223 = vadd.f32 %v2149, %v2222
  %v2224 = vpop.f32.mrf.mxu0
  %2225 = vmatprep.mubr.f32.mxu0 0.0
  %2226 = vmatmul.mubr.f32.gmra.mxu0 %v1532
  %v2227 = vpop.f32.mrf.mxu0
  %v2228 = vadd.f32 %v2149, %v2227
  %v2229 = vpop.f32.mrf.mxu0
  %2230 = vmatprep.mubr.f32.mxu0 0.0
  %2231 = vmatmul.mubr.f32.gmra.mxu0 %v1634
  %v2232 = vpop.f32.mrf.mxu0
  %v2233 = vadd.f32 %v2149, %v2232
  %v2234 = vpop.f32.mrf.mxu0
  %2235 = vmatprep.mubr.f32.mxu0 0.0
  %2236 = vmatmul.mubr.f32.gmra.mxu0 %v1736
  %v2237 = vpop.f32.mrf.mxu0
  %v2238 = vadd.f32 %v2149, %v2237
  %v2239 = vpop.f32.mrf.mxu0
  %2240 = vmatprep.mubr.f32.mxu0 0.0
  %2241 = vmatmul.mubr.f32.gmra.mxu0 %v1838
  %v2242 = vpop.f32.mrf.mxu0
  %v2243 = vadd.f32 %v2149, %v2242
  %v2244 = vpop.f32.mrf.mxu0
  %2245 = vmatprep.mubr.f32.mxu0 0.0
  %2246 = vmatmul.mubr.f32.gmra.mxu0 %v1940
  %v2247 = vpop.f32.mrf.mxu0
  %v2248 = vadd.f32 %v2149, %v2247
  %v2249 = vpop.f32.mrf.mxu0
  %2250 = vmatprep.mubr.f32.mxu0 0.0
  %2251 = vmatmul.mubr.f32.gmra.mxu0 %v2042
  %v2252 = vpop.f32.mrf.mxu0
  %v2253 = vadd.f32 %v2149, %v2252
  %v2254 = vpop.f32.mrf.mxu0
  %2255 = vmatprep.mubr.f32.mxu0 0.0
  %2256 = vmatmul.mubr.f32.gmra.mxu0 %v2154
  %v2257 = vpop.f32.mrf.mxu0
  %v2258 = vadd.f32 %v2149, %v2257
  %v2259 = vpop.f32.mrf.mxu0
  %2260 = vdwg.mxu0
  %2261 = vst.msk [vmem:[%s14] sm:$0xff] %vm73, %v2223
  %2262 = vst.msk [vmem:[%s14 + $0x8] sm:$0xff] %vm73, %v2228
  %2263 = vst.msk [vmem:[%s14 + $0x10] sm:$0xff] %vm73, %v2233
  %2264 = vst.msk [vmem:[%s14 + $0x18] sm:$0xff] %vm73, %v2238
  %2265 = vst.msk [vmem:[%s14 + $0x20] sm:$0xff] %vm73, %v2243
  %2266 = vst.msk [vmem:[%s14 + $0x28] sm:$0xff] %vm73, %v2248
  %2267 = vst.msk [vmem:[%s14 + $0x30] sm:$0xff] %vm73, %v2253
  %2268 = vst.msk [vmem:[%s14 + $0x38] sm:$0xff] %vm73, %v2258
  // Predicated region
  $region58: #{error_vae_forward.1} parent=0 // pred_check
    _
  $region59: #{error_vae_forward.1} parent=0 // pred_check_branch
    %2270 = sbr.rel (0) target = $region61
  $region60: #{error_vae_forward.1} parent=0 // pred_region
    _
  $region61: #{error_vae_forward.1} parent=0 // pred_fallthru
    _
  // Predicated region
  $region62: #{error_vae_forward.1} parent=0 // pred_check
    _
  $region63: #{error_vae_forward.1} parent=0 // pred_check_branch
    %2272 = sbr.rel (0) target = $region65
  $region64: #{error_vae_forward.1} parent=0 // pred_region
    _
  $region65: #{error_vae_forward.1} parent=0 // pred_fallthru
    _
  // Predicated region
  $region66: #{error_vae_forward.1} parent=0 // pred_check
    _
  $region67: #{error_vae_forward.1} parent=0 // pred_check_branch
    %2274 = sbr.rel (0) target = $region69
  $region68: #{error_vae_forward.1} parent=0 // pred_region
    _
  $region69: #{error_vae_forward.1} parent=0 // pred_fallthru
    _
  // Predicated region
  $region70: #{error_vae_forward.1} parent=0 // pred_check
    _
  $region71: #{error_vae_forward.1} parent=0 // pred_check_branch
    %2276 = sbr.rel (0) target = $region73
  $region72: #{error_vae_forward.1} parent=0 // pred_region
    _
  $region73: #{error_vae_forward.1} parent=0 // pred_fallthru
    _
  // Predicated region
  $region74: #{error_vae_forward.1} parent=0 // pred_check
    _
  $region75: #{error_vae_forward.1} parent=0 // pred_check_branch
    %2278 = sbr.rel (0) target = $region77
  $region76: #{error_vae_forward.1} parent=0 // pred_region
    _
  $region77: #{error_vae_forward.1} parent=0 // pred_fallthru
    _
  // Predicated region
  $region78: #{error_vae_forward.1} parent=0 // pred_check
    _
  $region79: #{error_vae_forward.1} parent=0 // pred_check_branch
    %2280 = sbr.rel (0) target = $region81
  $region80: #{error_vae_forward.1} parent=0 // pred_region
    _
  $region81: #{error_vae_forward.1} parent=0 // pred_fallthru
    _

</llo_original>
